<compile_context>
chip_gen: v5e
topology: v5e:2x2
jax: 0.10.0
libtpu: 0.0.40
codegen_flags: <defaults>
</compile_context>

<pallas_src>
import jax
import jax.numpy as jnp
from jax.experimental import pallas as pl
from jax.experimental.pallas import tpu as pltpu

SAMPLES = 100
EPS = 1e-5       # PyTorch BatchNorm1d default eps
LANE = 128       # TPU lane width; pack segments at lane-aligned offsets

# (name, width) of every small per-feature parameter packed into a single
# (1, PACKED_WIDTH) lane-aligned slab.  b1/b2/b3 are intentionally absent
# (cancelled by train-mode BN); w4/b4 are replaced by their class-difference.
_PACKED_SEGMENTS = (
    ("g1", SAMPLES * 3), ("be1", SAMPLES * 3),
    ("g2", 400), ("be2", 400),
    ("g3", 100), ("be3", 100),
    ("wd", 100),            # w4[:,1] - w4[:,0]
    ("bd", 1),              # b4[1]   - b4[0]
)


def _layout():
    offs, cur = {}, 0
    for name, w in _PACKED_SEGMENTS:
        offs[name] = (cur, w)
        cur += ((w + LANE - 1) // LANE) * LANE   # next segment starts lane-aligned
    return offs, cur


PARAM_OFFS, PACKED_WIDTH = _layout()            # PACKED_WIDTH == 2304


def mlp_kernel(x_ref, w1_ref, p_ref, w2_hbm, w3_hbm, out_ref,
               w2_buf, w3_buf, sem):
    """Entire forward pass in one grid-less kernel.

    w2/w3 live in HBM (memory_space=pl.ANY); their DMAs are issued immediately
    and waited on just before use, overlapping with the layer-1/2 compute.
    """
    cp2 = pltpu.make_async_copy(w2_hbm, w2_buf, sem.at[0])
    cp3 = pltpu.make_async_copy(w3_hbm, w3_buf, sem.at[1])
    cp2.start()
    cp3.start()

    x = x_ref[...]

    def seg(name):
        start, width = PARAM_OFFS[name]
        return p_ref[:, start:start + width]              # (1, width), lane-aligned

    def bn_relu(h, gname, bname):
        # Training-mode BatchNorm1d folded into one FMA per element:
        #   scale = gamma * rsqrt(var + eps);  shift = beta - mu * scale
        # Two-pass (h - mu)^2 variance for numerical robustness.
        mu = jnp.mean(h, axis=0, keepdims=True)
        c = h - mu
        var = jnp.mean(c * c, axis=0, keepdims=True)
        scale = seg(gname) * jax.lax.rsqrt(var + EPS)
        shift = seg(bname) - mu * scale
        return jnp.maximum(h * scale + shift, 0.0)

    # NOTE: linear biases b1/b2/b3 are omitted on purpose — they are exactly
    # cancelled by the batch-mean subtraction of *training-mode* BatchNorm.
    # If BN is ever switched to eval mode (running stats), restore them.
    h = bn_relu(jnp.dot(x, w1_ref[...], preferred_element_type=jnp.float32),
                "g1", "be1")                               # (B, 300)

    cp2.wait()
    h = bn_relu(jnp.dot(h, w2_buf[...], preferred_element_type=jnp.float32),
                "g2", "be2")                               # (B, 400)

    cp3.wait()
    h = bn_relu(jnp.dot(h, w3_buf[...], preferred_element_type=jnp.float32),
                "g3", "be3")                               # (B, 100)

    # Final layer folded to the logit *difference* column:
    #   d = h @ (w4[:,1]-w4[:,0]) + (b4[1]-b4[0]);  2-class softmax == sigmoid(d).
    d = jnp.sum(h * seg("wd"), axis=1, keepdims=True) + seg("bd")   # (B, 1)
    p1 = 1.0 / (1.0 + jnp.exp(-d))
    col = jax.lax.broadcasted_iota(jnp.int32, out_ref.shape, 1)
    out_ref[...] = jnp.where(col == 0, 1.0 - p1, p1)


def net_test_forward(x, params):
    B = x.shape[0]
    (w1, _b1, g1, be1), (w2, _b2, g2, be2), (w3, _b3, g3, be3), (w4, b4) = params

    # Wrapper-side fold of the last layer into a single difference column.
    wd = (w4[:, 1] - w4[:, 0]).reshape(1, SAMPLES)
    bd = (b4[:, 1] - b4[:, 0]).reshape(1, 1)

    # Pack all small per-feature vectors into one lane-aligned slab.
    packed = jnp.zeros((1, PACKED_WIDTH), jnp.float32)
    for name, val in (("g1", g1), ("be1", be1), ("g2", g2), ("be2", be2),
                      ("g3", g3), ("be3", be3), ("wd", wd), ("bd", bd)):
        start, width = PARAM_OFFS[name]
        packed = packed.at[:, start:start + width].set(val)

    flops = 2 * B * (SAMPLES * SAMPLES * 3 + SAMPLES * 3 * 400 + 400 * 100 + 100)
    bytes_accessed = 4 * (x.size + w1.size + w2.size + w3.size
                          + packed.size + B * 2)

    return pl.pallas_call(
        mlp_kernel,
        out_shape=jax.ShapeDtypeStruct((B, 2), jnp.float32),
        # Grid-less: x / w1 / packed slab are VMEM-resident single blocks;
        # w2 / w3 stay in place (HBM) and are DMA'd manually for overlap.
        in_specs=[
            pl.BlockSpec(memory_space=pltpu.VMEM),   # x        (needed first)
            pl.BlockSpec(memory_space=pltpu.VMEM),   # w1       (needed first)
            pl.BlockSpec(memory_space=pltpu.VMEM),   # packed   (~9 KB)
            pl.BlockSpec(memory_space=pl.ANY),       # w2  -> manual async copy
            pl.BlockSpec(memory_space=pl.ANY),       # w3  -> manual async copy
        ],
        out_specs=pl.BlockSpec(memory_space=pltpu.VMEM),
        scratch_shapes=[
            pltpu.VMEM((SAMPLES * 3, 400), jnp.float32),   # w2 landing buffer
            pltpu.VMEM((400, 100), jnp.float32),           # w3 landing buffer
            pltpu.SemaphoreType.DMA((2,)),
        ],
        cost_estimate=pl.CostEstimate(
            flops=flops, transcendentals=808, bytes_accessed=bytes_accessed),
    )(x, w1, packed, w2, w3)


def init_params(key):
    """Deterministic init mirroring PyTorch defaults.

    Linear: U(-1/sqrt(fan_in), 1/sqrt(fan_in)) for weight and bias.
    BatchNorm1d: gamma = 1, beta = 0.
    """
    layer_dims = [(SAMPLES, SAMPLES * 3), (SAMPLES * 3, 400), (400, 100), (100, 2)]
    params = []
    for i, (fin, fout) in enumerate(layer_dims):
        key, kw, kb = jax.random.split(key, 3)
        bound = 1.0 / (fin ** 0.5)
        w = jax.random.uniform(kw, (fin, fout), jnp.float32, -bound, bound)
        b = jax.random.uniform(kb, (1, fout), jnp.float32, -bound, bound)
        if i < 3:  # layers followed by BatchNorm1d
            g = jnp.ones((1, fout), jnp.float32)
            be = jnp.zeros((1, fout), jnp.float32)
            params.append((w, b, g, be))
        else:
            params.append((w, b))
    return params


def reference_forward(x, params):
    """Pure-JAX reference matching the PyTorch forward (biases kept, std softmax)."""
    h = x
    for i, p in enumerate(params):
        if i < 3:
            w, b, g, be = p
            h = h @ w + b
            mu = jnp.mean(h, axis=0, keepdims=True)
            var = jnp.mean((h - mu) ** 2, axis=0, keepdims=True)
            h = jnp.maximum((h - mu) * jax.lax.rsqrt(var + EPS) * g + be, 0.0)
        else:
            w, b = p
            h = h @ w + b
    return jax.nn.softmax(h, axis=1)


if __name__ == "__main__":
    key = jax.random.PRNGKey(0)
    key, kx = jax.random.split(key)

    B = 8
    # torch.flatten(x, 1) over an input that flattens to `samples` features;
    # we feed the already-flat (B, SAMPLES) layout.
    x = jax.random.normal(kx, (B, SAMPLES), jnp.float32)

    params = init_params(key)

    out = net_test_forward(x, params)
    out = jax.block_until_ready(out)

    ref = reference_forward(x, params)
    assert out.shape == (B, 2)
    assert jnp.allclose(out, ref, atol=1e-5, rtol=1e-5), "mismatch vs JAX reference"
    assert jnp.allclose(jnp.sum(out, axis=1), 1.0, atol=1e-5), "softmax rows must sum to 1"

    # TODO(synk): BatchNorm running-stat updates (training side effect) are not
    # modeled; they do not affect the forward output in train mode.
    print("KERNEL_OK")
</pallas_src>

<mosaic_0001>
module attributes {stable_mosaic.version = 11 : i64} {
  func.func @mlp_kernel(%arg0: memref<8x100xf32, #tpu.memory_space<vmem>>, %arg1: memref<100x300xf32, #tpu.memory_space<vmem>>, %arg2: memref<1x2304xf32, #tpu.memory_space<vmem>>, %arg3: memref<300x400xf32, #tpu.memory_space<any>>, %arg4: memref<400x100xf32, #tpu.memory_space<any>>, %arg5: memref<8x2xf32, #tpu.memory_space<vmem>>, %arg6: memref<300x400xf32, #tpu.memory_space<vmem>>, %arg7: memref<400x100xf32, #tpu.memory_space<vmem>>, %arg8: memref<2x!tpu.dma_semaphore, #tpu.memory_space<semaphore_mem>>) attributes {dimension_semantics = [], scalar_prefetch = 0 : i64, scratch_operands = 3 : i64, tpu.core_type = #tpu.core_type<tc>} {
    %c0_i32 = arith.constant 0 : i32
    %0 = tpu.memref_slice %arg8[%c0_i32] : memref<2x!tpu.dma_semaphore, #tpu.memory_space<semaphore_mem>> -> memref<1x!tpu.dma_semaphore, #tpu.memory_space<semaphore_mem>>
    %1 = tpu.memref_squeeze %0 : memref<1x!tpu.dma_semaphore, #tpu.memory_space<semaphore_mem>> -> memref<!tpu.dma_semaphore, #tpu.memory_space<semaphore_mem>>
    tpu.enqueue_dma source(%arg3 : memref<300x400xf32, #tpu.memory_space<any>>) target(%arg6 : memref<300x400xf32, #tpu.memory_space<vmem>>) target_semaphore(%1 : memref<!tpu.dma_semaphore, #tpu.memory_space<semaphore_mem>>)
    %c1_i32 = arith.constant 1 : i32
    %2 = tpu.memref_slice %arg8[%c1_i32] : memref<2x!tpu.dma_semaphore, #tpu.memory_space<semaphore_mem>> -> memref<1x!tpu.dma_semaphore, #tpu.memory_space<semaphore_mem>>
    %3 = tpu.memref_squeeze %2 : memref<1x!tpu.dma_semaphore, #tpu.memory_space<semaphore_mem>> -> memref<!tpu.dma_semaphore, #tpu.memory_space<semaphore_mem>>
    tpu.enqueue_dma source(%arg4 : memref<400x100xf32, #tpu.memory_space<any>>) target(%arg7 : memref<400x100xf32, #tpu.memory_space<vmem>>) target_semaphore(%3 : memref<!tpu.dma_semaphore, #tpu.memory_space<semaphore_mem>>)
    %c0 = arith.constant 0 : index
    %c0_0 = arith.constant 0 : index
    %4 = vector.load %arg0[%c0, %c0_0] : memref<8x100xf32, #tpu.memory_space<vmem>>, vector<8x100xf32>
    %c0_1 = arith.constant 0 : index
    %c0_2 = arith.constant 0 : index
    %5 = vector.load %arg1[%c0_1, %c0_2] : memref<100x300xf32, #tpu.memory_space<vmem>>, vector<100x300xf32>
    %cst = arith.constant dense<0.000000e+00> : vector<8x300xf32>
    %6 = tpu.matmul %4, %5, %cst {dimension_numbers = #tpu.dot_dimension_numbers<[1], [0], [0], [1], [0, 0, 1, 1], [], []>} : vector<8x100xf32>, vector<100x300xf32>, vector<8x300xf32> -> vector<8x300xf32>
    %cst_3 = arith.constant dense<0.000000e+00> : vector<300xf32>
    %7 = vector.multi_reduction <add>, %6, %cst_3 [0] : vector<8x300xf32> to vector<300xf32>
    %8 = vector.shape_cast %7 : vector<300xf32> to vector<1x300xf32>
    %cst_4 = arith.constant 8.000000e+00 : f32
    %9 = vector.broadcast %cst_4 : f32 to vector<1x300xf32>
    %10 = arith.divf %8, %9 : vector<1x300xf32>
    %11 = vector.broadcast %10 : vector<1x300xf32> to vector<8x300xf32>
    %12 = arith.subf %6, %11 : vector<8x300xf32>
    %13 = arith.mulf %12, %12 : vector<8x300xf32>
    %cst_5 = arith.constant dense<0.000000e+00> : vector<300xf32>
    %14 = vector.multi_reduction <add>, %13, %cst_5 [0] : vector<8x300xf32> to vector<300xf32>
    %15 = vector.shape_cast %14 : vector<300xf32> to vector<1x300xf32>
    %cst_6 = arith.constant 8.000000e+00 : f32
    %16 = vector.broadcast %cst_6 : f32 to vector<1x300xf32>
    %17 = arith.divf %15, %16 : vector<1x300xf32>
    %c0_7 = arith.constant 0 : index
    %c0_8 = arith.constant 0 : index
    %18 = vector.load %arg2[%c0_7, %c0_8] : memref<1x2304xf32, #tpu.memory_space<vmem>>, vector<1x300xf32>
    %cst_9 = arith.constant 9.99999974E-6 : f32
    %19 = vector.broadcast %cst_9 : f32 to vector<1x300xf32>
    %20 = arith.addf %17, %19 : vector<1x300xf32>
    %21 = math.rsqrt %20 : vector<1x300xf32>
    %22 = arith.mulf %18, %21 : vector<1x300xf32>
    %c0_10 = arith.constant 0 : index
    %c384 = arith.constant 384 : index
    %23 = vector.load %arg2[%c0_10, %c384] : memref<1x2304xf32, #tpu.memory_space<vmem>>, vector<1x300xf32>
    %24 = arith.mulf %10, %22 : vector<1x300xf32>
    %25 = arith.subf %23, %24 : vector<1x300xf32>
    %26 = vector.broadcast %22 : vector<1x300xf32> to vector<8x300xf32>
    %27 = arith.mulf %6, %26 : vector<8x300xf32>
    %28 = vector.broadcast %25 : vector<1x300xf32> to vector<8x300xf32>
    %29 = arith.addf %27, %28 : vector<8x300xf32>
    %cst_11 = arith.constant 0.000000e+00 : f32
    %30 = vector.broadcast %cst_11 : f32 to vector<8x300xf32>
    %31 = arith.maximumf %29, %30 : vector<8x300xf32>
    %c0_i32_12 = arith.constant 0 : i32
    %32 = tpu.memref_slice %arg8[%c0_i32_12] : memref<2x!tpu.dma_semaphore, #tpu.memory_space<semaphore_mem>> -> memref<1x!tpu.dma_semaphore, #tpu.memory_space<semaphore_mem>>
    %33 = tpu.memref_squeeze %32 : memref<1x!tpu.dma_semaphore, #tpu.memory_space<semaphore_mem>> -> memref<!tpu.dma_semaphore, #tpu.memory_space<semaphore_mem>>
    tpu.wait_dma2 semaphore(%33 : memref<!tpu.dma_semaphore, #tpu.memory_space<semaphore_mem>>) src(%arg3 : memref<300x400xf32, #tpu.memory_space<any>>) dst(%arg6 : memref<300x400xf32, #tpu.memory_space<vmem>>)
    %c0_13 = arith.constant 0 : index
    %c0_14 = arith.constant 0 : index
    %34 = vector.load %arg6[%c0_13, %c0_14] : memref<300x400xf32, #tpu.memory_space<vmem>>, vector<300x400xf32>
    %cst_15 = arith.constant dense<0.000000e+00> : vector<8x400xf32>
    %35 = tpu.matmul %31, %34, %cst_15 {dimension_numbers = #tpu.dot_dimension_numbers<[1], [0], [0], [1], [0, 0, 1, 1], [], []>} : vector<8x300xf32>, vector<300x400xf32>, vector<8x400xf32> -> vector<8x400xf32>
    %cst_16 = arith.constant dense<0.000000e+00> : vector<400xf32>
    %36 = vector.multi_reduction <add>, %35, %cst_16 [0] : vector<8x400xf32> to vector<400xf32>
    %37 = vector.shape_cast %36 : vector<400xf32> to vector<1x400xf32>
    %cst_17 = arith.constant 8.000000e+00 : f32
    %38 = vector.broadcast %cst_17 : f32 to vector<1x400xf32>
    %39 = arith.divf %37, %38 : vector<1x400xf32>
    %40 = vector.broadcast %39 : vector<1x400xf32> to vector<8x400xf32>
    %41 = arith.subf %35, %40 : vector<8x400xf32>
    %42 = arith.mulf %41, %41 : vector<8x400xf32>
    %cst_18 = arith.constant dense<0.000000e+00> : vector<400xf32>
    %43 = vector.multi_reduction <add>, %42, %cst_18 [0] : vector<8x400xf32> to vector<400xf32>
    %44 = vector.shape_cast %43 : vector<400xf32> to vector<1x400xf32>
    %cst_19 = arith.constant 8.000000e+00 : f32
    %45 = vector.broadcast %cst_19 : f32 to vector<1x400xf32>
    %46 = arith.divf %44, %45 : vector<1x400xf32>
    %c0_20 = arith.constant 0 : index
    %c768 = arith.constant 768 : index
    %47 = vector.load %arg2[%c0_20, %c768] : memref<1x2304xf32, #tpu.memory_space<vmem>>, vector<1x400xf32>
    %cst_21 = arith.constant 9.99999974E-6 : f32
    %48 = vector.broadcast %cst_21 : f32 to vector<1x400xf32>
    %49 = arith.addf %46, %48 : vector<1x400xf32>
    %50 = math.rsqrt %49 : vector<1x400xf32>
    %51 = arith.mulf %47, %50 : vector<1x400xf32>
    %c0_22 = arith.constant 0 : index
    %c1280 = arith.constant 1280 : index
    %52 = vector.load %arg2[%c0_22, %c1280] : memref<1x2304xf32, #tpu.memory_space<vmem>>, vector<1x400xf32>
    %53 = arith.mulf %39, %51 : vector<1x400xf32>
    %54 = arith.subf %52, %53 : vector<1x400xf32>
    %55 = vector.broadcast %51 : vector<1x400xf32> to vector<8x400xf32>
    %56 = arith.mulf %35, %55 : vector<8x400xf32>
    %57 = vector.broadcast %54 : vector<1x400xf32> to vector<8x400xf32>
    %58 = arith.addf %56, %57 : vector<8x400xf32>
    %cst_23 = arith.constant 0.000000e+00 : f32
    %59 = vector.broadcast %cst_23 : f32 to vector<8x400xf32>
    %60 = arith.maximumf %58, %59 : vector<8x400xf32>
    %c1_i32_24 = arith.constant 1 : i32
    %61 = tpu.memref_slice %arg8[%c1_i32_24] : memref<2x!tpu.dma_semaphore, #tpu.memory_space<semaphore_mem>> -> memref<1x!tpu.dma_semaphore, #tpu.memory_space<semaphore_mem>>
    %62 = tpu.memref_squeeze %61 : memref<1x!tpu.dma_semaphore, #tpu.memory_space<semaphore_mem>> -> memref<!tpu.dma_semaphore, #tpu.memory_space<semaphore_mem>>
    tpu.wait_dma2 semaphore(%62 : memref<!tpu.dma_semaphore, #tpu.memory_space<semaphore_mem>>) src(%arg4 : memref<400x100xf32, #tpu.memory_space<any>>) dst(%arg7 : memref<400x100xf32, #tpu.memory_space<vmem>>)
    %c0_25 = arith.constant 0 : index
    %c0_26 = arith.constant 0 : index
    %63 = vector.load %arg7[%c0_25, %c0_26] : memref<400x100xf32, #tpu.memory_space<vmem>>, vector<400x100xf32>
    %cst_27 = arith.constant dense<0.000000e+00> : vector<8x100xf32>
    %64 = tpu.matmul %60, %63, %cst_27 {dimension_numbers = #tpu.dot_dimension_numbers<[1], [0], [0], [1], [0, 0, 1, 1], [], []>} : vector<8x400xf32>, vector<400x100xf32>, vector<8x100xf32> -> vector<8x100xf32>
    %cst_28 = arith.constant dense<0.000000e+00> : vector<100xf32>
    %65 = vector.multi_reduction <add>, %64, %cst_28 [0] : vector<8x100xf32> to vector<100xf32>
    %66 = vector.shape_cast %65 : vector<100xf32> to vector<1x100xf32>
    %cst_29 = arith.constant 8.000000e+00 : f32
    %67 = vector.broadcast %cst_29 : f32 to vector<1x100xf32>
    %68 = arith.divf %66, %67 : vector<1x100xf32>
    %69 = vector.broadcast %68 : vector<1x100xf32> to vector<8x100xf32>
    %70 = arith.subf %64, %69 : vector<8x100xf32>
    %71 = arith.mulf %70, %70 : vector<8x100xf32>
    %cst_30 = arith.constant dense<0.000000e+00> : vector<100xf32>
    %72 = vector.multi_reduction <add>, %71, %cst_30 [0] : vector<8x100xf32> to vector<100xf32>
    %73 = vector.shape_cast %72 : vector<100xf32> to vector<1x100xf32>
    %cst_31 = arith.constant 8.000000e+00 : f32
    %74 = vector.broadcast %cst_31 : f32 to vector<1x100xf32>
    %75 = arith.divf %73, %74 : vector<1x100xf32>
    %c0_32 = arith.constant 0 : index
    %c1792 = arith.constant 1792 : index
    %76 = vector.load %arg2[%c0_32, %c1792] : memref<1x2304xf32, #tpu.memory_space<vmem>>, vector<1x100xf32>
    %cst_33 = arith.constant 9.99999974E-6 : f32
    %77 = vector.broadcast %cst_33 : f32 to vector<1x100xf32>
    %78 = arith.addf %75, %77 : vector<1x100xf32>
    %79 = math.rsqrt %78 : vector<1x100xf32>
    %80 = arith.mulf %76, %79 : vector<1x100xf32>
    %c0_34 = arith.constant 0 : index
    %c1920 = arith.constant 1920 : index
    %81 = vector.load %arg2[%c0_34, %c1920] : memref<1x2304xf32, #tpu.memory_space<vmem>>, vector<1x100xf32>
    %82 = arith.mulf %68, %80 : vector<1x100xf32>
    %83 = arith.subf %81, %82 : vector<1x100xf32>
    %84 = vector.broadcast %80 : vector<1x100xf32> to vector<8x100xf32>
    %85 = arith.mulf %64, %84 : vector<8x100xf32>
    %86 = vector.broadcast %83 : vector<1x100xf32> to vector<8x100xf32>
    %87 = arith.addf %85, %86 : vector<8x100xf32>
    %cst_35 = arith.constant 0.000000e+00 : f32
    %88 = vector.broadcast %cst_35 : f32 to vector<8x100xf32>
    %89 = arith.maximumf %87, %88 : vector<8x100xf32>
    %c0_36 = arith.constant 0 : index
    %c2048 = arith.constant 2048 : index
    %90 = vector.load %arg2[%c0_36, %c2048] : memref<1x2304xf32, #tpu.memory_space<vmem>>, vector<1x100xf32>
    %91 = vector.broadcast %90 : vector<1x100xf32> to vector<8x100xf32>
    %92 = arith.mulf %89, %91 : vector<8x100xf32>
    %cst_37 = arith.constant dense<0.000000e+00> : vector<8xf32>
    %93 = vector.multi_reduction <add>, %92, %cst_37 [1] : vector<8x100xf32> to vector<8xf32>
    %94 = vector.shape_cast %93 : vector<8xf32> to vector<8x1xf32>
    %c0_38 = arith.constant 0 : index
    %c2176 = arith.constant 2176 : index
    %95 = vector.load %arg2[%c0_38, %c2176] : memref<1x2304xf32, #tpu.memory_space<vmem>>, vector<1x1xf32>
    %96 = vector.broadcast %95 : vector<1x1xf32> to vector<8x1xf32>
    %97 = arith.addf %94, %96 : vector<8x1xf32>
    %cst_39 = arith.constant 0.000000e+00 : f32
    %98 = vector.broadcast %cst_39 : f32 to vector<8x1xf32>
    %99 = arith.subf %98, %97 : vector<8x1xf32>
    %100 = math.exp %99 : vector<8x1xf32>
    %cst_40 = arith.constant 1.000000e+00 : f32
    %101 = vector.broadcast %cst_40 : f32 to vector<8x1xf32>
    %102 = arith.addf %101, %100 : vector<8x1xf32>
    %cst_41 = arith.constant 1.000000e+00 : f32
    %103 = vector.broadcast %cst_41 : f32 to vector<8x1xf32>
    %104 = arith.divf %103, %102 : vector<8x1xf32>
    %105 = tpu.iota {dimensions = array<i32: 1>} : vector<8x2xi32>
    %c0_i32_42 = arith.constant 0 : i32
    %106 = vector.broadcast %c0_i32_42 : i32 to vector<8x2xi32>
    %107 = arith.cmpi eq, %105, %106 : vector<8x2xi32>
    %cst_43 = arith.constant 1.000000e+00 : f32
    %108 = vector.broadcast %cst_43 : f32 to vector<8x1xf32>
    %109 = arith.subf %108, %104 : vector<8x1xf32>
    %110 = vector.shape_cast %109 : vector<8x1xf32> to vector<8x1xf32>
    %111 = vector.broadcast %110 : vector<8x1xf32> to vector<8x2xf32>
    %112 = vector.shape_cast %104 : vector<8x1xf32> to vector<8x1xf32>
    %113 = vector.broadcast %112 : vector<8x1xf32> to vector<8x2xf32>
    %114 = arith.select %107, %111, %113 : vector<8x2xi1>, vector<8x2xf32>
    %c0_44 = arith.constant 0 : index
    %c0_45 = arith.constant 0 : index
    %115 = vector.load %arg5[%c0_44, %c0_45] : memref<8x2xf32, #tpu.memory_space<vmem>>, vector<8x2xf32>
    tpu.vector_store %arg5[%c0_44, %c0_45], %114 {strides = array<i32>} : memref<8x2xf32, #tpu.memory_space<vmem>>, vector<8x2xf32>,
    return
  }
}

</mosaic_0001>

<llo_original>
// kernel: tpu_custom_call.1
$region0: #{tpu_custom_call.1}
  #allocation0 [shape = 'u32[]', space=smem, size = 0x4, offset = 0x4, fixed_abs, tag = 'smem constant byte address 0x4 - core index']
  #allocation1 [shape = 'u32[72,128]{1,0:T(1,128)}', space=vmem, size = 0x9000, scoped, tag = 'internal scratch']
  #allocation2 [shape = 'f32[300,400]{1,0:T(8,128)}', space=vmem, size = 0x98000, scoped, tag = 'scratch operand']
  #allocation3 [shape = 'f32[400,100]{1,0:T(8,128)}', space=vmem, size = 0x32000, scoped, tag = 'scratch operand']
  #allocation4 [shape = 's32[2]{0}', space=sflag, size = 0x8, scoped, tag = 'scratch operand']
  #allocation5 [shape = 's32[]', space=sflag, size = 0x4, offset = 0, fixed_abs, tag = 'sflag constant byte address 0x0 - dummy sync flag']
  #allocation6 [shape = 's32[]', space=sflag, size = 0x4, offset = 0, fixed_abs, tag = 'sflag constant byte address 0x0 - dummy sync flag']
  %s0 = inlined_call_operand.vmem [shape: f32[8,100], index: 0, kind: input, shape index: {}]
  %s1 = inlined_call_operand.vmem [shape: f32[100,300], index: 1, kind: input, shape index: {}]
  %s2 = inlined_call_operand.vmem [shape: f32[1,2304], index: 2, kind: input, shape index: {}]
  %s3 = inlined_call_operand.vmem [shape: f32[300,400], index: 3, kind: input, shape index: {}]
  %s4 = inlined_call_operand.vmem [shape: f32[400,100], index: 4, kind: input, shape index: {}]
  %s5 = inlined_call_operand.vmem [shape: f32[8,2], index: 5, kind: output, shape index: {}]
  %s6 = sld [smem:[#allocation0]]
  $region60: #{tpu_custom_call.1} parent=0
    _
  %s8 = ssub.s32 1, %s6
  %s9 = scalar_select 0, %s8, %s6
  // Predicated region
  $region2: #{tpu_custom_call.1} parent=0 // pred_check
    _
  $region3: #{tpu_custom_call.1} parent=0 // pred_check_branch
    %11 = sbr.rel (0) target = $region5
  $region4: #{tpu_custom_call.1} parent=0 // pred_region
    _
  $region5: #{tpu_custom_call.1} parent=0 // pred_fallthru
    _
  // Predicated region
  $region6: #{tpu_custom_call.1} parent=0 // pred_check
    _
  $region7: #{tpu_custom_call.1} parent=0 // pred_check_branch
    %13 = sbr.rel (0) target = $region9
  $region8: #{tpu_custom_call.1} parent=0 // pred_region
    _
  $region9: #{tpu_custom_call.1} parent=0 // pred_fallthru
    _
  // Predicated region
  $region10: #{tpu_custom_call.1} parent=0 // pred_check
    _
  $region11: #{tpu_custom_call.1} parent=0 // pred_check_branch
    %15 = sbr.rel (0) target = $region13
  $region12: #{tpu_custom_call.1} parent=0 // pred_region
    _
  $region13: #{tpu_custom_call.1} parent=0 // pred_fallthru
    _
  // Predicated region
  $region14: #{tpu_custom_call.1} parent=0 // pred_check
    _
  $region15: #{tpu_custom_call.1} parent=0 // pred_check_branch
    %17 = sbr.rel (0) target = $region17
  $region16: #{tpu_custom_call.1} parent=0 // pred_region
    loop: start=0, step=1, limit=1
    $region18: #{tpu_custom_call.1} parent=16 // loop_pre_header
      _
    $region19: #{tpu_custom_call.1} parent=16 // loop_header
      %s19 = sphi 0, %s23
      %p20 = scmp.ge.s32.totalorder %s19, 1
      %s24 = sphi %s3, %s3
      %s25 = sphi [#allocation2], [#allocation2]
    $region20: #{tpu_custom_call.1} parent=16 // loop_header_branch
      %22 = sbr.rel (%p20) target = $region24
    $region21: #{tpu_custom_call.1} parent=16 // loop_body
      %v26 = vld [vmem:[%s24] sm:$0xff]
      %27 = vst [vmem:[%s25] sm:$0xff] %v26
      %v28 = vld [vmem:[%s24 + $0x8] sm:$0xff]
      %29 = vst [vmem:[%s25 + $0x8] sm:$0xff] %v28
      %v30 = vld [vmem:[%s24 + $0x10] sm:$0xff]
      %31 = vst [vmem:[%s25 + $0x10] sm:$0xff] %v30
      %v32 = vld [vmem:[%s24 + $0x18] sm:$0xff]
      %33 = vst [vmem:[%s25 + $0x18] sm:$0xff] %v32
      %v34 = vld [vmem:[%s24 + $0x20] sm:$0xff]
      %35 = vst [vmem:[%s25 + $0x20] sm:$0xff] %v34
      %v36 = vld [vmem:[%s24 + $0x28] sm:$0xff]
      %37 = vst [vmem:[%s25 + $0x28] sm:$0xff] %v36
      %v38 = vld [vmem:[%s24 + $0x30] sm:$0xff]
      %39 = vst [vmem:[%s25 + $0x30] sm:$0xff] %v38
      %v40 = vld [vmem:[%s24 + $0x38] sm:$0xff]
      %41 = vst [vmem:[%s25 + $0x38] sm:$0xff] %v40
      %v42 = vld [vmem:[%s24 + $0x40] sm:$0xff]
      %43 = vst [vmem:[%s25 + $0x40] sm:$0xff] %v42
      %v44 = vld [vmem:[%s24 + $0x48] sm:$0xff]
      %45 = vst [vmem:[%s25 + $0x48] sm:$0xff] %v44
      %v46 = vld [vmem:[%s24 + $0x50] sm:$0xff]
      %47 = vst [vmem:[%s25 + $0x50] sm:$0xff] %v46
      %v48 = vld [vmem:[%s24 + $0x58] sm:$0xff]
      %49 = vst [vmem:[%s25 + $0x58] sm:$0xff] %v48
      %v50 = vld [vmem:[%s24 + $0x60] sm:$0xff]
      %51 = vst [vmem:[%s25 + $0x60] sm:$0xff] %v50
      %v52 = vld [vmem:[%s24 + $0x68] sm:$0xff]
      %53 = vst [vmem:[%s25 + $0x68] sm:$0xff] %v52
      %v54 = vld [vmem:[%s24 + $0x70] sm:$0xff]
      %55 = vst [vmem:[%s25 + $0x70] sm:$0xff] %v54
      %v56 = vld [vmem:[%s24 + $0x78] sm:$0xff]
      %57 = vst [vmem:[%s25 + $0x78] sm:$0xff] %v56
      %v58 = vld [vmem:[%s24 + $0x80] sm:$0xff]
      %59 = vst [vmem:[%s25 + $0x80] sm:$0xff] %v58
      %v60 = vld [vmem:[%s24 + $0x88] sm:$0xff]
      %61 = vst [vmem:[%s25 + $0x88] sm:$0xff] %v60
      %v62 = vld [vmem:[%s24 + $0x90] sm:$0xff]
      %63 = vst [vmem:[%s25 + $0x90] sm:$0xff] %v62
      %v64 = vld [vmem:[%s24 + $0x98] sm:$0xff]
      %65 = vst [vmem:[%s25 + $0x98] sm:$0xff] %v64
      %v66 = vld [vmem:[%s24 + $0xa0] sm:$0xff]
      %67 = vst [vmem:[%s25 + $0xa0] sm:$0xff] %v66
      %v68 = vld [vmem:[%s24 + $0xa8] sm:$0xff]
      %69 = vst [vmem:[%s25 + $0xa8] sm:$0xff] %v68
      %v70 = vld [vmem:[%s24 + $0xb0] sm:$0xff]
      %71 = vst [vmem:[%s25 + $0xb0] sm:$0xff] %v70
      %v72 = vld [vmem:[%s24 + $0xb8] sm:$0xff]
      %73 = vst [vmem:[%s25 + $0xb8] sm:$0xff] %v72
      %v74 = vld [vmem:[%s24 + $0xc0] sm:$0xff]
      %75 = vst [vmem:[%s25 + $0xc0] sm:$0xff] %v74
      %v76 = vld [vmem:[%s24 + $0xc8] sm:$0xff]
      %77 = vst [vmem:[%s25 + $0xc8] sm:$0xff] %v76
      %v78 = vld [vmem:[%s24 + $0xd0] sm:$0xff]
      %79 = vst [vmem:[%s25 + $0xd0] sm:$0xff] %v78
      %v80 = vld [vmem:[%s24 + $0xd8] sm:$0xff]
      %81 = vst [vmem:[%s25 + $0xd8] sm:$0xff] %v80
      %v82 = vld [vmem:[%s24 + $0xe0] sm:$0xff]
      %83 = vst [vmem:[%s25 + $0xe0] sm:$0xff] %v82
      %v84 = vld [vmem:[%s24 + $0xe8] sm:$0xff]
      %85 = vst [vmem:[%s25 + $0xe8] sm:$0xff] %v84
      %v86 = vld [vmem:[%s24 + $0xf0] sm:$0xff]
      %87 = vst [vmem:[%s25 + $0xf0] sm:$0xff] %v86
      %v88 = vld [vmem:[%s24 + $0xf8] sm:$0xff]
      %89 = vst [vmem:[%s25 + $0xf8] sm:$0xff] %v88
      %v90 = vld [vmem:[%s24 + $0x100] sm:$0xff]
      %91 = vst [vmem:[%s25 + $0x100] sm:$0xff] %v90
      %v92 = vld [vmem:[%s24 + $0x108] sm:$0xff]
      %93 = vst [vmem:[%s25 + $0x108] sm:$0xff] %v92
      %v94 = vld [vmem:[%s24 + $0x110] sm:$0xff]
      %95 = vst [vmem:[%s25 + $0x110] sm:$0xff] %v94
      %v96 = vld [vmem:[%s24 + $0x118] sm:$0xff]
      %97 = vst [vmem:[%s25 + $0x118] sm:$0xff] %v96
      %v98 = vld [vmem:[%s24 + $0x120] sm:$0xff]
      %99 = vst [vmem:[%s25 + $0x120] sm:$0xff] %v98
      %v100 = vld [vmem:[%s24 + $0x128] sm:$0xff]
      %101 = vst [vmem:[%s25 + $0x128] sm:$0xff] %v100
      %v102 = vld [vmem:[%s24 + $0x130] sm:$0xff]
      %103 = vst [vmem:[%s25 + $0x130] sm:$0xff] %v102
      %v104 = vld [vmem:[%s24 + $0x138] sm:$0xff]
      %105 = vst [vmem:[%s25 + $0x138] sm:$0xff] %v104
      %v106 = vld [vmem:[%s24 + $0x140] sm:$0xff]
      %107 = vst [vmem:[%s25 + $0x140] sm:$0xff] %v106
      %v108 = vld [vmem:[%s24 + $0x148] sm:$0xff]
      %109 = vst [vmem:[%s25 + $0x148] sm:$0xff] %v108
      %v110 = vld [vmem:[%s24 + $0x150] sm:$0xff]
      %111 = vst [vmem:[%s25 + $0x150] sm:$0xff] %v110
      %v112 = vld [vmem:[%s24 + $0x158] sm:$0xff]
      %113 = vst [vmem:[%s25 + $0x158] sm:$0xff] %v112
      %v114 = vld [vmem:[%s24 + $0x160] sm:$0xff]
      %115 = vst [vmem:[%s25 + $0x160] sm:$0xff] %v114
      %v116 = vld [vmem:[%s24 + $0x168] sm:$0xff]
      %117 = vst [vmem:[%s25 + $0x168] sm:$0xff] %v116
      %v118 = vld [vmem:[%s24 + $0x170] sm:$0xff]
      %119 = vst [vmem:[%s25 + $0x170] sm:$0xff] %v118
      %v120 = vld [vmem:[%s24 + $0x178] sm:$0xff]
      %121 = vst [vmem:[%s25 + $0x178] sm:$0xff] %v120
      %v122 = vld [vmem:[%s24 + $0x180] sm:$0xff]
      %123 = vst [vmem:[%s25 + $0x180] sm:$0xff] %v122
      %v124 = vld [vmem:[%s24 + $0x188] sm:$0xff]
      %125 = vst [vmem:[%s25 + $0x188] sm:$0xff] %v124
      %v126 = vld [vmem:[%s24 + $0x190] sm:$0xff]
      %127 = vst [vmem:[%s25 + $0x190] sm:$0xff] %v126
      %v128 = vld [vmem:[%s24 + $0x198] sm:$0xff]
      %129 = vst [vmem:[%s25 + $0x198] sm:$0xff] %v128
      %v130 = vld [vmem:[%s24 + $0x1a0] sm:$0xff]
      %131 = vst [vmem:[%s25 + $0x1a0] sm:$0xff] %v130
      %v132 = vld [vmem:[%s24 + $0x1a8] sm:$0xff]
      %133 = vst [vmem:[%s25 + $0x1a8] sm:$0xff] %v132
      %v134 = vld [vmem:[%s24 + $0x1b0] sm:$0xff]
      %135 = vst [vmem:[%s25 + $0x1b0] sm:$0xff] %v134
      %v136 = vld [vmem:[%s24 + $0x1b8] sm:$0xff]
      %137 = vst [vmem:[%s25 + $0x1b8] sm:$0xff] %v136
      %v138 = vld [vmem:[%s24 + $0x1c0] sm:$0xff]
      %139 = vst [vmem:[%s25 + $0x1c0] sm:$0xff] %v138
      %v140 = vld [vmem:[%s24 + $0x1c8] sm:$0xff]
      %141 = vst [vmem:[%s25 + $0x1c8] sm:$0xff] %v140
      %v142 = vld [vmem:[%s24 + $0x1d0] sm:$0xff]
      %143 = vst [vmem:[%s25 + $0x1d0] sm:$0xff] %v142
      %v144 = vld [vmem:[%s24 + $0x1d8] sm:$0xff]
      %145 = vst [vmem:[%s25 + $0x1d8] sm:$0xff] %v144
      %v146 = vld [vmem:[%s24 + $0x1e0] sm:$0xff]
      %147 = vst [vmem:[%s25 + $0x1e0] sm:$0xff] %v146
      %v148 = vld [vmem:[%s24 + $0x1e8] sm:$0xff]
      %149 = vst [vmem:[%s25 + $0x1e8] sm:$0xff] %v148
      %v150 = vld [vmem:[%s24 + $0x1f0] sm:$0xff]
      %151 = vst [vmem:[%s25 + $0x1f0] sm:$0xff] %v150
      %v152 = vld [vmem:[%s24 + $0x1f8] sm:$0xff]
      %153 = vst [vmem:[%s25 + $0x1f8] sm:$0xff] %v152
      %v154 = vld [vmem:[%s24 + $0x200] sm:$0xff]
      %155 = vst [vmem:[%s25 + $0x200] sm:$0xff] %v154
      %v156 = vld [vmem:[%s24 + $0x208] sm:$0xff]
      %157 = vst [vmem:[%s25 + $0x208] sm:$0xff] %v156
      %v158 = vld [vmem:[%s24 + $0x210] sm:$0xff]
      %159 = vst [vmem:[%s25 + $0x210] sm:$0xff] %v158
      %v160 = vld [vmem:[%s24 + $0x218] sm:$0xff]
      %161 = vst [vmem:[%s25 + $0x218] sm:$0xff] %v160
      %v162 = vld [vmem:[%s24 + $0x220] sm:$0xff]
      %163 = vst [vmem:[%s25 + $0x220] sm:$0xff] %v162
      %v164 = vld [vmem:[%s24 + $0x228] sm:$0xff]
      %165 = vst [vmem:[%s25 + $0x228] sm:$0xff] %v164
      %v166 = vld [vmem:[%s24 + $0x230] sm:$0xff]
      %167 = vst [vmem:[%s25 + $0x230] sm:$0xff] %v166
      %v168 = vld [vmem:[%s24 + $0x238] sm:$0xff]
      %169 = vst [vmem:[%s25 + $0x238] sm:$0xff] %v168
      %v170 = vld [vmem:[%s24 + $0x240] sm:$0xff]
      %171 = vst [vmem:[%s25 + $0x240] sm:$0xff] %v170
      %v172 = vld [vmem:[%s24 + $0x248] sm:$0xff]
      %173 = vst [vmem:[%s25 + $0x248] sm:$0xff] %v172
      %v174 = vld [vmem:[%s24 + $0x250] sm:$0xff]
      %175 = vst [vmem:[%s25 + $0x250] sm:$0xff] %v174
      %v176 = vld [vmem:[%s24 + $0x258] sm:$0xff]
      %177 = vst [vmem:[%s25 + $0x258] sm:$0xff] %v176
      %v178 = vld [vmem:[%s24 + $0x260] sm:$0xff]
      %179 = vst [vmem:[%s25 + $0x260] sm:$0xff] %v178
      %v180 = vld [vmem:[%s24 + $0x268] sm:$0xff]
      %181 = vst [vmem:[%s25 + $0x268] sm:$0xff] %v180
      %v182 = vld [vmem:[%s24 + $0x270] sm:$0xff]
      %183 = vst [vmem:[%s25 + $0x270] sm:$0xff] %v182
      %v184 = vld [vmem:[%s24 + $0x278] sm:$0xff]
      %185 = vst [vmem:[%s25 + $0x278] sm:$0xff] %v184
      %v186 = vld [vmem:[%s24 + $0x280] sm:$0xff]
      %187 = vst [vmem:[%s25 + $0x280] sm:$0xff] %v186
      %v188 = vld [vmem:[%s24 + $0x288] sm:$0xff]
      %189 = vst [vmem:[%s25 + $0x288] sm:$0xff] %v188
      %v190 = vld [vmem:[%s24 + $0x290] sm:$0xff]
      %191 = vst [vmem:[%s25 + $0x290] sm:$0xff] %v190
      %v192 = vld [vmem:[%s24 + $0x298] sm:$0xff]
      %193 = vst [vmem:[%s25 + $0x298] sm:$0xff] %v192
      %v194 = vld [vmem:[%s24 + $0x2a0] sm:$0xff]
      %195 = vst [vmem:[%s25 + $0x2a0] sm:$0xff] %v194
      %v196 = vld [vmem:[%s24 + $0x2a8] sm:$0xff]
      %197 = vst [vmem:[%s25 + $0x2a8] sm:$0xff] %v196
      %v198 = vld [vmem:[%s24 + $0x2b0] sm:$0xff]
      %199 = vst [vmem:[%s25 + $0x2b0] sm:$0xff] %v198
      %v200 = vld [vmem:[%s24 + $0x2b8] sm:$0xff]
      %201 = vst [vmem:[%s25 + $0x2b8] sm:$0xff] %v200
      %v202 = vld [vmem:[%s24 + $0x2c0] sm:$0xff]
      %203 = vst [vmem:[%s25 + $0x2c0] sm:$0xff] %v202
      %v204 = vld [vmem:[%s24 + $0x2c8] sm:$0xff]
      %205 = vst [vmem:[%s25 + $0x2c8] sm:$0xff] %v204
      %v206 = vld [vmem:[%s24 + $0x2d0] sm:$0xff]
      %207 = vst [vmem:[%s25 + $0x2d0] sm:$0xff] %v206
      %v208 = vld [vmem:[%s24 + $0x2d8] sm:$0xff]
      %209 = vst [vmem:[%s25 + $0x2d8] sm:$0xff] %v208
      %v210 = vld [vmem:[%s24 + $0x2e0] sm:$0xff]
      %211 = vst [vmem:[%s25 + $0x2e0] sm:$0xff] %v210
      %v212 = vld [vmem:[%s24 + $0x2e8] sm:$0xff]
      %213 = vst [vmem:[%s25 + $0x2e8] sm:$0xff] %v212
      %v214 = vld [vmem:[%s24 + $0x2f0] sm:$0xff]
      %215 = vst [vmem:[%s25 + $0x2f0] sm:$0xff] %v214
      %v216 = vld [vmem:[%s24 + $0x2f8] sm:$0xff]
      %217 = vst [vmem:[%s25 + $0x2f8] sm:$0xff] %v216
      %v218 = vld [vmem:[%s24 + $0x300] sm:$0xff]
      %219 = vst [vmem:[%s25 + $0x300] sm:$0xff] %v218
      %v220 = vld [vmem:[%s24 + $0x308] sm:$0xff]
      %221 = vst [vmem:[%s25 + $0x308] sm:$0xff] %v220
      %v222 = vld [vmem:[%s24 + $0x310] sm:$0xff]
      %223 = vst [vmem:[%s25 + $0x310] sm:$0xff] %v222
      %v224 = vld [vmem:[%s24 + $0x318] sm:$0xff]
      %225 = vst [vmem:[%s25 + $0x318] sm:$0xff] %v224
      %v226 = vld [vmem:[%s24 + $0x320] sm:$0xff]
      %227 = vst [vmem:[%s25 + $0x320] sm:$0xff] %v226
      %v228 = vld [vmem:[%s24 + $0x328] sm:$0xff]
      %229 = vst [vmem:[%s25 + $0x328] sm:$0xff] %v228
      %v230 = vld [vmem:[%s24 + $0x330] sm:$0xff]
      %231 = vst [vmem:[%s25 + $0x330] sm:$0xff] %v230
      %v232 = vld [vmem:[%s24 + $0x338] sm:$0xff]
      %233 = vst [vmem:[%s25 + $0x338] sm:$0xff] %v232
      %v234 = vld [vmem:[%s24 + $0x340] sm:$0xff]
      %235 = vst [vmem:[%s25 + $0x340] sm:$0xff] %v234
      %v236 = vld [vmem:[%s24 + $0x348] sm:$0xff]
      %237 = vst [vmem:[%s25 + $0x348] sm:$0xff] %v236
      %v238 = vld [vmem:[%s24 + $0x350] sm:$0xff]
      %239 = vst [vmem:[%s25 + $0x350] sm:$0xff] %v238
      %v240 = vld [vmem:[%s24 + $0x358] sm:$0xff]
      %241 = vst [vmem:[%s25 + $0x358] sm:$0xff] %v240
      %v242 = vld [vmem:[%s24 + $0x360] sm:$0xff]
      %243 = vst [vmem:[%s25 + $0x360] sm:$0xff] %v242
      %v244 = vld [vmem:[%s24 + $0x368] sm:$0xff]
      %245 = vst [vmem:[%s25 + $0x368] sm:$0xff] %v244
      %v246 = vld [vmem:[%s24 + $0x370] sm:$0xff]
      %247 = vst [vmem:[%s25 + $0x370] sm:$0xff] %v246
      %v248 = vld [vmem:[%s24 + $0x378] sm:$0xff]
      %249 = vst [vmem:[%s25 + $0x378] sm:$0xff] %v248
      %v250 = vld [vmem:[%s24 + $0x380] sm:$0xff]
      %251 = vst [vmem:[%s25 + $0x380] sm:$0xff] %v250
      %v252 = vld [vmem:[%s24 + $0x388] sm:$0xff]
      %253 = vst [vmem:[%s25 + $0x388] sm:$0xff] %v252
      %v254 = vld [vmem:[%s24 + $0x390] sm:$0xff]
      %255 = vst [vmem:[%s25 + $0x390] sm:$0xff] %v254
      %v256 = vld [vmem:[%s24 + $0x398] sm:$0xff]
      %257 = vst [vmem:[%s25 + $0x398] sm:$0xff] %v256
      %v258 = vld [vmem:[%s24 + $0x3a0] sm:$0xff]
      %259 = vst [vmem:[%s25 + $0x3a0] sm:$0xff] %v258
      %v260 = vld [vmem:[%s24 + $0x3a8] sm:$0xff]
      %261 = vst [vmem:[%s25 + $0x3a8] sm:$0xff] %v260
      %v262 = vld [vmem:[%s24 + $0x3b0] sm:$0xff]
      %263 = vst [vmem:[%s25 + $0x3b0] sm:$0xff] %v262
      %v264 = vld [vmem:[%s24 + $0x3b8] sm:$0xff]
      %265 = vst [vmem:[%s25 + $0x3b8] sm:$0xff] %v264
      %v266 = vld [vmem:[%s24 + $0x3c0] sm:$0xff]
      %267 = vst [vmem:[%s25 + $0x3c0] sm:$0xff] %v266
      %v268 = vld [vmem:[%s24 + $0x3c8] sm:$0xff]
      %269 = vst [vmem:[%s25 + $0x3c8] sm:$0xff] %v268
      %v270 = vld [vmem:[%s24 + $0x3d0] sm:$0xff]
      %271 = vst [vmem:[%s25 + $0x3d0] sm:$0xff] %v270
      %v272 = vld [vmem:[%s24 + $0x3d8] sm:$0xff]
      %273 = vst [vmem:[%s25 + $0x3d8] sm:$0xff] %v272
      %v274 = vld [vmem:[%s24 + $0x3e0] sm:$0xff]
      %275 = vst [vmem:[%s25 + $0x3e0] sm:$0xff] %v274
      %v276 = vld [vmem:[%s24 + $0x3e8] sm:$0xff]
      %277 = vst [vmem:[%s25 + $0x3e8] sm:$0xff] %v276
      %v278 = vld [vmem:[%s24 + $0x3f0] sm:$0xff]
      %279 = vst [vmem:[%s25 + $0x3f0] sm:$0xff] %v278
      %v280 = vld [vmem:[%s24 + $0x3f8] sm:$0xff]
      %281 = vst [vmem:[%s25 + $0x3f8] sm:$0xff] %v280
      %v282 = vld [vmem:[%s24 + $0x400] sm:$0xff]
      %283 = vst [vmem:[%s25 + $0x400] sm:$0xff] %v282
      %v284 = vld [vmem:[%s24 + $0x408] sm:$0xff]
      %285 = vst [vmem:[%s25 + $0x408] sm:$0xff] %v284
      %v286 = vld [vmem:[%s24 + $0x410] sm:$0xff]
      %287 = vst [vmem:[%s25 + $0x410] sm:$0xff] %v286
      %v288 = vld [vmem:[%s24 + $0x418] sm:$0xff]
      %289 = vst [vmem:[%s25 + $0x418] sm:$0xff] %v288
      %v290 = vld [vmem:[%s24 + $0x420] sm:$0xff]
      %291 = vst [vmem:[%s25 + $0x420] sm:$0xff] %v290
      %v292 = vld [vmem:[%s24 + $0x428] sm:$0xff]
      %293 = vst [vmem:[%s25 + $0x428] sm:$0xff] %v292
      %v294 = vld [vmem:[%s24 + $0x430] sm:$0xff]
      %295 = vst [vmem:[%s25 + $0x430] sm:$0xff] %v294
      %v296 = vld [vmem:[%s24 + $0x438] sm:$0xff]
      %297 = vst [vmem:[%s25 + $0x438] sm:$0xff] %v296
      %v298 = vld [vmem:[%s24 + $0x440] sm:$0xff]
      %299 = vst [vmem:[%s25 + $0x440] sm:$0xff] %v298
      %v300 = vld [vmem:[%s24 + $0x448] sm:$0xff]
      %301 = vst [vmem:[%s25 + $0x448] sm:$0xff] %v300
      %v302 = vld [vmem:[%s24 + $0x450] sm:$0xff]
      %303 = vst [vmem:[%s25 + $0x450] sm:$0xff] %v302
      %v304 = vld [vmem:[%s24 + $0x458] sm:$0xff]
      %305 = vst [vmem:[%s25 + $0x458] sm:$0xff] %v304
      %v306 = vld [vmem:[%s24 + $0x460] sm:$0xff]
      %307 = vst [vmem:[%s25 + $0x460] sm:$0xff] %v306
      %v308 = vld [vmem:[%s24 + $0x468] sm:$0xff]
      %309 = vst [vmem:[%s25 + $0x468] sm:$0xff] %v308
      %v310 = vld [vmem:[%s24 + $0x470] sm:$0xff]
      %311 = vst [vmem:[%s25 + $0x470] sm:$0xff] %v310
      %v312 = vld [vmem:[%s24 + $0x478] sm:$0xff]
      %313 = vst [vmem:[%s25 + $0x478] sm:$0xff] %v312
      %v314 = vld [vmem:[%s24 + $0x480] sm:$0xff]
      %315 = vst [vmem:[%s25 + $0x480] sm:$0xff] %v314
      %v316 = vld [vmem:[%s24 + $0x488] sm:$0xff]
      %317 = vst [vmem:[%s25 + $0x488] sm:$0xff] %v316
      %v318 = vld [vmem:[%s24 + $0x490] sm:$0xff]
      %319 = vst [vmem:[%s25 + $0x490] sm:$0xff] %v318
      %v320 = vld [vmem:[%s24 + $0x498] sm:$0xff]
      %321 = vst [vmem:[%s25 + $0x498] sm:$0xff] %v320
      %v322 = vld [vmem:[%s24 + $0x4a0] sm:$0xff]
      %323 = vst [vmem:[%s25 + $0x4a0] sm:$0xff] %v322
      %v324 = vld [vmem:[%s24 + $0x4a8] sm:$0xff]
      %325 = vst [vmem:[%s25 + $0x4a8] sm:$0xff] %v324
      %v326 = vld [vmem:[%s24 + $0x4b0] sm:$0xff]
      %327 = vst [vmem:[%s25 + $0x4b0] sm:$0xff] %v326
      %v328 = vld [vmem:[%s24 + $0x4b8] sm:$0xff]
      %329 = vst [vmem:[%s25 + $0x4b8] sm:$0xff] %v328
    $region22: #{tpu_custom_call.1} parent=16 // loop_footer
      %s23 = sadd.s32 1, %s19
    $region23: #{tpu_custom_call.1} parent=16 // loop_footer_branch
      %18 = sbr.rel target = $region19
    $region24: #{tpu_custom_call.1} parent=16 // loop_exit
      _
  $region17: #{tpu_custom_call.1} parent=0 // pred_fallthru
    _
  // Predicated region
  $region25: #{tpu_custom_call.1} parent=0 // pred_check
    _
  $region26: #{tpu_custom_call.1} parent=0 // pred_check_branch
    %331 = sbr.rel target = $region28
  $region27: #{tpu_custom_call.1} parent=0 // pred_region
    _
  $region28: #{tpu_custom_call.1} parent=0 // pred_fallthru
    _
  // Predicated region
  $region29: #{tpu_custom_call.1} parent=0 // pred_check
    _
  $region30: #{tpu_custom_call.1} parent=0 // pred_check_branch
    %334 = sbr.rel (0) target = $region32
  $region31: #{tpu_custom_call.1} parent=0 // pred_region
    %335 = vsyncadd [#allocation4], 19456
  $region32: #{tpu_custom_call.1} parent=0 // pred_fallthru
    _
  %s336 = scalar_lea.sflag [#allocation4], 1
  // Predicated region
  $region33: #{tpu_custom_call.1} parent=0 // pred_check
    _
  $region34: #{tpu_custom_call.1} parent=0 // pred_check_branch
    %338 = sbr.rel (0) target = $region36
  $region35: #{tpu_custom_call.1} parent=0 // pred_region
    loop: start=0, step=1, limit=1
    $region37: #{tpu_custom_call.1} parent=35 // loop_pre_header
      _
    $region38: #{tpu_custom_call.1} parent=35 // loop_header
      %s340 = sphi 0, %s344
      %p341 = scmp.ge.s32.totalorder %s340, 1
      %s345 = sphi %s4, %s4
      %s346 = sphi [#allocation3], [#allocation3]
    $region39: #{tpu_custom_call.1} parent=35 // loop_header_branch
      %343 = sbr.rel (%p341) target = $region43
    $region40: #{tpu_custom_call.1} parent=35 // loop_body
      %v347 = vld [vmem:[%s345] sm:$0xff]
      %348 = vst [vmem:[%s346] sm:$0xff] %v347
      %v349 = vld [vmem:[%s345 + $0x8] sm:$0xff]
      %350 = vst [vmem:[%s346 + $0x8] sm:$0xff] %v349
      %v351 = vld [vmem:[%s345 + $0x10] sm:$0xff]
      %352 = vst [vmem:[%s346 + $0x10] sm:$0xff] %v351
      %v353 = vld [vmem:[%s345 + $0x18] sm:$0xff]
      %354 = vst [vmem:[%s346 + $0x18] sm:$0xff] %v353
      %v355 = vld [vmem:[%s345 + $0x20] sm:$0xff]
      %356 = vst [vmem:[%s346 + $0x20] sm:$0xff] %v355
      %v357 = vld [vmem:[%s345 + $0x28] sm:$0xff]
      %358 = vst [vmem:[%s346 + $0x28] sm:$0xff] %v357
      %v359 = vld [vmem:[%s345 + $0x30] sm:$0xff]
      %360 = vst [vmem:[%s346 + $0x30] sm:$0xff] %v359
      %v361 = vld [vmem:[%s345 + $0x38] sm:$0xff]
      %362 = vst [vmem:[%s346 + $0x38] sm:$0xff] %v361
      %v363 = vld [vmem:[%s345 + $0x40] sm:$0xff]
      %364 = vst [vmem:[%s346 + $0x40] sm:$0xff] %v363
      %v365 = vld [vmem:[%s345 + $0x48] sm:$0xff]
      %366 = vst [vmem:[%s346 + $0x48] sm:$0xff] %v365
      %v367 = vld [vmem:[%s345 + $0x50] sm:$0xff]
      %368 = vst [vmem:[%s346 + $0x50] sm:$0xff] %v367
      %v369 = vld [vmem:[%s345 + $0x58] sm:$0xff]
      %370 = vst [vmem:[%s346 + $0x58] sm:$0xff] %v369
      %v371 = vld [vmem:[%s345 + $0x60] sm:$0xff]
      %372 = vst [vmem:[%s346 + $0x60] sm:$0xff] %v371
      %v373 = vld [vmem:[%s345 + $0x68] sm:$0xff]
      %374 = vst [vmem:[%s346 + $0x68] sm:$0xff] %v373
      %v375 = vld [vmem:[%s345 + $0x70] sm:$0xff]
      %376 = vst [vmem:[%s346 + $0x70] sm:$0xff] %v375
      %v377 = vld [vmem:[%s345 + $0x78] sm:$0xff]
      %378 = vst [vmem:[%s346 + $0x78] sm:$0xff] %v377
      %v379 = vld [vmem:[%s345 + $0x80] sm:$0xff]
      %380 = vst [vmem:[%s346 + $0x80] sm:$0xff] %v379
      %v381 = vld [vmem:[%s345 + $0x88] sm:$0xff]
      %382 = vst [vmem:[%s346 + $0x88] sm:$0xff] %v381
      %v383 = vld [vmem:[%s345 + $0x90] sm:$0xff]
      %384 = vst [vmem:[%s346 + $0x90] sm:$0xff] %v383
      %v385 = vld [vmem:[%s345 + $0x98] sm:$0xff]
      %386 = vst [vmem:[%s346 + $0x98] sm:$0xff] %v385
      %v387 = vld [vmem:[%s345 + $0xa0] sm:$0xff]
      %388 = vst [vmem:[%s346 + $0xa0] sm:$0xff] %v387
      %v389 = vld [vmem:[%s345 + $0xa8] sm:$0xff]
      %390 = vst [vmem:[%s346 + $0xa8] sm:$0xff] %v389
      %v391 = vld [vmem:[%s345 + $0xb0] sm:$0xff]
      %392 = vst [vmem:[%s346 + $0xb0] sm:$0xff] %v391
      %v393 = vld [vmem:[%s345 + $0xb8] sm:$0xff]
      %394 = vst [vmem:[%s346 + $0xb8] sm:$0xff] %v393
      %v395 = vld [vmem:[%s345 + $0xc0] sm:$0xff]
      %396 = vst [vmem:[%s346 + $0xc0] sm:$0xff] %v395
      %v397 = vld [vmem:[%s345 + $0xc8] sm:$0xff]
      %398 = vst [vmem:[%s346 + $0xc8] sm:$0xff] %v397
      %v399 = vld [vmem:[%s345 + $0xd0] sm:$0xff]
      %400 = vst [vmem:[%s346 + $0xd0] sm:$0xff] %v399
      %v401 = vld [vmem:[%s345 + $0xd8] sm:$0xff]
      %402 = vst [vmem:[%s346 + $0xd8] sm:$0xff] %v401
      %v403 = vld [vmem:[%s345 + $0xe0] sm:$0xff]
      %404 = vst [vmem:[%s346 + $0xe0] sm:$0xff] %v403
      %v405 = vld [vmem:[%s345 + $0xe8] sm:$0xff]
      %406 = vst [vmem:[%s346 + $0xe8] sm:$0xff] %v405
      %v407 = vld [vmem:[%s345 + $0xf0] sm:$0xff]
      %408 = vst [vmem:[%s346 + $0xf0] sm:$0xff] %v407
      %v409 = vld [vmem:[%s345 + $0xf8] sm:$0xff]
      %410 = vst [vmem:[%s346 + $0xf8] sm:$0xff] %v409
      %v411 = vld [vmem:[%s345 + $0x100] sm:$0xff]
      %412 = vst [vmem:[%s346 + $0x100] sm:$0xff] %v411
      %v413 = vld [vmem:[%s345 + $0x108] sm:$0xff]
      %414 = vst [vmem:[%s346 + $0x108] sm:$0xff] %v413
      %v415 = vld [vmem:[%s345 + $0x110] sm:$0xff]
      %416 = vst [vmem:[%s346 + $0x110] sm:$0xff] %v415
      %v417 = vld [vmem:[%s345 + $0x118] sm:$0xff]
      %418 = vst [vmem:[%s346 + $0x118] sm:$0xff] %v417
      %v419 = vld [vmem:[%s345 + $0x120] sm:$0xff]
      %420 = vst [vmem:[%s346 + $0x120] sm:$0xff] %v419
      %v421 = vld [vmem:[%s345 + $0x128] sm:$0xff]
      %422 = vst [vmem:[%s346 + $0x128] sm:$0xff] %v421
      %v423 = vld [vmem:[%s345 + $0x130] sm:$0xff]
      %424 = vst [vmem:[%s346 + $0x130] sm:$0xff] %v423
      %v425 = vld [vmem:[%s345 + $0x138] sm:$0xff]
      %426 = vst [vmem:[%s346 + $0x138] sm:$0xff] %v425
      %v427 = vld [vmem:[%s345 + $0x140] sm:$0xff]
      %428 = vst [vmem:[%s346 + $0x140] sm:$0xff] %v427
      %v429 = vld [vmem:[%s345 + $0x148] sm:$0xff]
      %430 = vst [vmem:[%s346 + $0x148] sm:$0xff] %v429
      %v431 = vld [vmem:[%s345 + $0x150] sm:$0xff]
      %432 = vst [vmem:[%s346 + $0x150] sm:$0xff] %v431
      %v433 = vld [vmem:[%s345 + $0x158] sm:$0xff]
      %434 = vst [vmem:[%s346 + $0x158] sm:$0xff] %v433
      %v435 = vld [vmem:[%s345 + $0x160] sm:$0xff]
      %436 = vst [vmem:[%s346 + $0x160] sm:$0xff] %v435
      %v437 = vld [vmem:[%s345 + $0x168] sm:$0xff]
      %438 = vst [vmem:[%s346 + $0x168] sm:$0xff] %v437
      %v439 = vld [vmem:[%s345 + $0x170] sm:$0xff]
      %440 = vst [vmem:[%s346 + $0x170] sm:$0xff] %v439
      %v441 = vld [vmem:[%s345 + $0x178] sm:$0xff]
      %442 = vst [vmem:[%s346 + $0x178] sm:$0xff] %v441
      %v443 = vld [vmem:[%s345 + $0x180] sm:$0xff]
      %444 = vst [vmem:[%s346 + $0x180] sm:$0xff] %v443
      %v445 = vld [vmem:[%s345 + $0x188] sm:$0xff]
      %446 = vst [vmem:[%s346 + $0x188] sm:$0xff] %v445
    $region41: #{tpu_custom_call.1} parent=35 // loop_footer
      %s344 = sadd.s32 1, %s340
    $region42: #{tpu_custom_call.1} parent=35 // loop_footer_branch
      %339 = sbr.rel target = $region38
    $region43: #{tpu_custom_call.1} parent=35 // loop_exit
      _
  $region36: #{tpu_custom_call.1} parent=0 // pred_fallthru
    _
  // Predicated region
  $region44: #{tpu_custom_call.1} parent=0 // pred_check
    _
  $region45: #{tpu_custom_call.1} parent=0 // pred_check_branch
    %448 = sbr.rel target = $region47
  $region46: #{tpu_custom_call.1} parent=0 // pred_region
    _
  $region47: #{tpu_custom_call.1} parent=0 // pred_fallthru
    _
  // Predicated region
  $region48: #{tpu_custom_call.1} parent=0 // pred_check
    _
  $region49: #{tpu_custom_call.1} parent=0 // pred_check_branch
    %451 = sbr.rel (0) target = $region51
  $region50: #{tpu_custom_call.1} parent=0 // pred_region
    %452 = vsyncadd %s336, 6400
  $region51: #{tpu_custom_call.1} parent=0 // pred_fallthru
    _
  %v453 = vld [vmem:[%s0] sm:$0xff]
  %v454 = vld [vmem:[%s1] sm:$0xff]
  %v455 = vld [vmem:[%s1 + $0x8] sm:$0xff]
  %v456 = vld [vmem:[%s1 + $0x10] sm:$0xff]
  %v457 = vld [vmem:[%s1 + $0x18] sm:$0xff]
  %v458 = vld [vmem:[%s1 + $0x20] sm:$0xff]
  %v459 = vld [vmem:[%s1 + $0x28] sm:$0xff]
  %v460 = vld [vmem:[%s1 + $0x30] sm:$0xff]
  %v461 = vld [vmem:[%s1 + $0x38] sm:$0xff]
  %v462 = vld [vmem:[%s1 + $0x40] sm:$0xff]
  %v463 = vld [vmem:[%s1 + $0x48] sm:$0xff]
  %v464 = vld [vmem:[%s1 + $0x50] sm:$0xff]
  %v465 = vld [vmem:[%s1 + $0x58] sm:$0xff]
  %v466 = vld [vmem:[%s1 + $0x60] sm:$0xff]
  %v467 = vld [vmem:[%s1 + $0x68] sm:$0xff]
  %v468 = vld [vmem:[%s1 + $0x70] sm:$0xff]
  %v469 = vld [vmem:[%s1 + $0x78] sm:$0xff]
  %v470 = vld [vmem:[%s1 + $0x80] sm:$0xff]
  %v471 = vld [vmem:[%s1 + $0x88] sm:$0xff]
  %v472 = vld [vmem:[%s1 + $0x90] sm:$0xff]
  %v473 = vld [vmem:[%s1 + $0x98] sm:$0xff]
  %v474 = vld [vmem:[%s1 + $0xa0] sm:$0xff]
  %v475 = vld [vmem:[%s1 + $0xa8] sm:$0xff]
  %v476 = vld [vmem:[%s1 + $0xb0] sm:$0xff]
  %v477 = vld [vmem:[%s1 + $0xb8] sm:$0xff]
  %v478 = vld [vmem:[%s1 + $0xc0] sm:$0xff]
  %v479 = vld [vmem:[%s1 + $0xc8] sm:$0xff]
  %v480 = vld [vmem:[%s1 + $0xd0] sm:$0xff]
  %v481 = vld [vmem:[%s1 + $0xd8] sm:$0xff]
  %v482 = vld [vmem:[%s1 + $0xe0] sm:$0xff]
  %v483 = vld [vmem:[%s1 + $0xe8] sm:$0xff]
  %v484 = vld [vmem:[%s1 + $0xf0] sm:$0xff]
  %v485 = vld [vmem:[%s1 + $0xf8] sm:$0xff]
  %v486 = vld [vmem:[%s1 + $0x100] sm:$0xff]
  %v487 = vld [vmem:[%s1 + $0x108] sm:$0xff]
  %v488 = vld [vmem:[%s1 + $0x110] sm:$0xff]
  %v489 = vld [vmem:[%s1 + $0x118] sm:$0xff]
  %v490 = vld [vmem:[%s1 + $0x120] sm:$0xf]
  %v491 = vld [vmem:[%s1 + $0x128] sm:$0xf]
  %v492 = vld [vmem:[%s1 + $0x130] sm:$0xf]
  %vm493 = vcmask 818176
  %v495 = vsel %vm493, %v453, 0
  %vm497 = vcmask 1043456
  %v499 = vsel %vm497, %v490, 0
  %v502 = vsel %vm497, %v491, 0
  %v505 = vsel %vm497, %v492, 0
  %507 = vmatpush.msra.mxu0 0.0
  %508 = vmatpush.msra.mxu0 0.0
  %509 = vmatpush.msra.mxu0 0.0
  %510 = vmatpush.msra.mxu0 %v499
  %511 = vmatpush.msra.mxu0 %v487
  %512 = vmatpush.msra.mxu0 %v484
  %513 = vmatpush.msra.mxu0 %v481
  %514 = vmatpush.msra.mxu0 %v478
  %515 = vmatpush.msra.mxu0 %v475
  %516 = vmatpush.msra.mxu0 %v472
  %517 = vmatpush.msra.mxu0 %v469
  %518 = vmatpush.msra.mxu0 %v466
  %519 = vmatpush.msra.mxu0 %v463
  %520 = vmatpush.msra.mxu0 %v460
  %521 = vmatpush.msra.mxu0 %v457
  %522 = vmatpush.msra.mxu0 %v454
  %523 = vmatmul.f32.gmra.mxu0 %v495
  %v524 = vpop.f32.mrf.mxu0
  %v525 = vadd.f32 0.0, %v524
  %526 = vdwg.mxu0
  %527 = vmatpush.msra.mxu0 0.0
  %528 = vmatpush.msra.mxu0 0.0
  %529 = vmatpush.msra.mxu0 0.0
  %530 = vmatpush.msra.mxu0 %v502
  %531 = vmatpush.msra.mxu0 %v488
  %532 = vmatpush.msra.mxu0 %v485
  %533 = vmatpush.msra.mxu0 %v482
  %534 = vmatpush.msra.mxu0 %v479
  %535 = vmatpush.msra.mxu0 %v476
  %536 = vmatpush.msra.mxu0 %v473
  %537 = vmatpush.msra.mxu0 %v470
  %538 = vmatpush.msra.mxu0 %v467
  %539 = vmatpush.msra.mxu0 %v464
  %540 = vmatpush.msra.mxu0 %v461
  %541 = vmatpush.msra.mxu0 %v458
  %542 = vmatpush.msra.mxu0 %v455
  %543 = vmatmul.f32.gmra.mxu0 %v495
  %v544 = vpop.f32.mrf.mxu0
  %v545 = vadd.f32 0.0, %v544
  %546 = vdwg.mxu0
  %547 = vmatpush.msra.mxu0 0.0
  %548 = vmatpush.msra.mxu0 0.0
  %549 = vmatpush.msra.mxu0 0.0
  %550 = vmatpush.msra.mxu0 %v505
  %551 = vmatpush.msra.mxu0 %v489
  %552 = vmatpush.msra.mxu0 %v486
  %553 = vmatpush.msra.mxu0 %v483
  %554 = vmatpush.msra.mxu0 %v480
  %555 = vmatpush.msra.mxu0 %v477
  %556 = vmatpush.msra.mxu0 %v474
  %557 = vmatpush.msra.mxu0 %v471
  %558 = vmatpush.msra.mxu0 %v468
  %559 = vmatpush.msra.mxu0 %v465
  %560 = vmatpush.msra.mxu0 %v462
  %561 = vmatpush.msra.mxu0 %v459
  %562 = vmatpush.msra.mxu0 %v456
  %563 = vmatmul.f32.gmra.mxu0 %v495
  %v564 = vpop.f32.mrf.mxu0
  %v565 = vadd.f32 0.0, %v564
  %566 = vdwg.mxu0
  %v567 = vrot.slane %v525, 4
  %v568 = vadd.f32 %v525, %v567
  %v569 = vrot.slane %v568, 2
  %v570 = vadd.f32 %v568, %v569
  %v571 = vrot.slane %v570, 1
  %v572 = vadd.f32 %v570, %v571
  %v573 = vrot.slane %v545, 4
  %v574 = vadd.f32 %v545, %v573
  %v575 = vrot.slane %v574, 2
  %v576 = vadd.f32 %v574, %v575
  %v577 = vrot.slane %v576, 1
  %v578 = vadd.f32 %v576, %v577
  %vm579 = vcmask 359424
  %v580 = vsel %vm579, %v565, 0.0
  %v581 = vrot.slane %v580, 4
  %v582 = vadd.f32 %v580, %v581
  %v583 = vrot.slane %v582, 2
  %v584 = vadd.f32 %v582, %v583
  %v585 = vrot.slane %v584, 1
  %v586 = vadd.f32 %v584, %v585
  %v587 = vrcp.pop 8.0
  %v588 = vmul.f32 8.0, %v587
  %v589 = vsub.f32 1.0, %v588
  %v590 = vmul.f32 %v587, %v589
  %v591 = vadd.f32 %v587, %v590
  %vm592 = vweird.f32 %v587
  %v593 = vsel %vm592, %v587, %v591
  %v594 = vmul.f32 %v572, %v593
  %v595 = vmul.f32 %v578, %v593
  %v596 = vmul.f32 %v586, %v593
  %v597 = vsub.f32 %v525, %v594
  %v598 = vsub.f32 %v545, %v595
  %v599 = vsub.f32 %v565, %v596
  %v600 = vmul.f32 %v597, %v597
  %v601 = vmul.f32 %v598, %v598
  %v602 = vmul.f32 %v599, %v599
  %v603 = vrot.slane %v600, 4
  %v604 = vadd.f32 %v600, %v603
  %v605 = vrot.slane %v604, 2
  %v606 = vadd.f32 %v604, %v605
  %v607 = vrot.slane %v606, 1
  %v608 = vadd.f32 %v606, %v607
  %v609 = vrot.slane %v601, 4
  %v610 = vadd.f32 %v601, %v609
  %v611 = vrot.slane %v610, 2
  %v612 = vadd.f32 %v610, %v611
  %v613 = vrot.slane %v612, 1
  %v614 = vadd.f32 %v612, %v613
  %v615 = vsel %vm579, %v602, 0.0
  %v616 = vrot.slane %v615, 4
  %v617 = vadd.f32 %v615, %v616
  %v618 = vrot.slane %v617, 2
  %v619 = vadd.f32 %v617, %v618
  %v620 = vrot.slane %v619, 1
  %v621 = vadd.f32 %v619, %v620
  %v622 = vmul.f32 %v608, %v593
  %v623 = vmul.f32 %v614, %v593
  %v624 = vmul.f32 %v621, %v593
  %v625 = vld [vmem:[%s2] sm:$0x7]
  %v626 = vadd.f32 %v622, 1e-05
  %v627 = vadd.f32 %v623, 1e-05
  %v628 = vadd.f32 %v624, 1e-05
  %v629 = vrsqrt.pop %v626
  %v630 = vmul.f32 %v629, %v626
  %v631 = vmul.f32 %v630, %v629
  %v632 = vmul.f32 0.5, %v631
  %v633 = vsub.f32 1.5, %v632
  %v634 = vmul.f32 %v629, %v633
  %vm635 = vweird.f32 %v626
  %vm636 = vweird.f32 %v629
  %vm637 = vmor %vm635, %vm636
  %v638 = vsel %vm637, %v629, %v634
  %v639 = vrsqrt.pop %v627
  %v640 = vmul.f32 %v639, %v627
  %v641 = vmul.f32 %v640, %v639
  %v642 = vmul.f32 0.5, %v641
  %v643 = vsub.f32 1.5, %v642
  %v644 = vmul.f32 %v639, %v643
  %vm645 = vweird.f32 %v627
  %vm646 = vweird.f32 %v639
  %vm647 = vmor %vm645, %vm646
  %v648 = vsel %vm647, %v639, %v644
  %v649 = vrsqrt.pop %v628
  %v650 = vmul.f32 %v649, %v628
  %v651 = vmul.f32 %v650, %v649
  %v652 = vmul.f32 0.5, %v651
  %v653 = vsub.f32 1.5, %v652
  %v654 = vmul.f32 %v649, %v653
  %vm655 = vweird.f32 %v628
  %vm656 = vweird.f32 %v649
  %vm657 = vmor %vm655, %vm656
  %v658 = vsel %vm657, %v649, %v654
  %v662 = vrot.slane %v648, 7
  %v663 = vrot.slane %v658, 6
  %vm664 = vcmask 1040384
  %v665 = vsel %vm664, %v638, %v662
  %vm666 = vcmask 1041408
  %v667 = vsel %vm666, %v665, %v663
  %v669 = vmul.f32 %v625, %v667
  %v670 = vld [vmem:[%s2 + $0x3] sm:$0x7]
  %v672 = vperm.slane %v669, 0
  %v673 = vperm.slane %v669, 1
  %v674 = vperm.slane %v669, 2
  %v678 = vmul.f32 %v594, %v672
  %v679 = vmul.f32 %v595, %v673
  %v680 = vmul.f32 %v596, %v674
  %v684 = vrot.slane %v679, 7
  %v685 = vrot.slane %v680, 6
  %v686 = vsel %vm664, %v678, %v684
  %v687 = vsel %vm666, %v686, %v685
  %v689 = vsub.f32 %v670, %v687
  %v690 = vmul.f32 %v525, %v672
  %v691 = vmul.f32 %v545, %v673
  %v692 = vmul.f32 %v565, %v674
  %v694 = vperm.slane %v689, 0
  %v695 = vperm.slane %v689, 1
  %v696 = vperm.slane %v689, 2
  %v700 = vadd.f32 %v690, %v694
  %v701 = vadd.f32 %v691, %v695
  %v702 = vadd.f32 %v692, %v696
  %v703 = vmax.f32 %v700, 0.0
  %v704 = vmax.f32 %v701, 0.0
  %v705 = vmax.f32 %v702, 0.0
  %s706 = smul.u32 8, 38
  %s707 = smul.u32 %s706, 4
  %s708 = sshll.u32 %s707, 4
  %709 = dma.done [#allocation4], %s708
  %v710 = vld [vmem:[#allocation2] sm:$0xff]
  %v711 = vld [vmem:[#allocation2 + $0x8] sm:$0xff]
  %v712 = vld [vmem:[#allocation2 + $0x10] sm:$0xff]
  %v713 = vld [vmem:[#allocation2 + $0x18] sm:$0xff]
  %v714 = vld [vmem:[#allocation2 + $0x20] sm:$0xff]
  %v715 = vld [vmem:[#allocation2 + $0x28] sm:$0xff]
  %v716 = vld [vmem:[#allocation2 + $0x30] sm:$0xff]
  %v717 = vld [vmem:[#allocation2 + $0x38] sm:$0xff]
  %v718 = vld [vmem:[#allocation2 + $0x40] sm:$0xff]
  %v719 = vld [vmem:[#allocation2 + $0x48] sm:$0xff]
  %v720 = vld [vmem:[#allocation2 + $0x50] sm:$0xff]
  %v721 = vld [vmem:[#allocation2 + $0x58] sm:$0xff]
  %v722 = vld [vmem:[#allocation2 + $0x60] sm:$0xff]
  %v723 = vld [vmem:[#allocation2 + $0x68] sm:$0xff]
  %v724 = vld [vmem:[#allocation2 + $0x70] sm:$0xff]
  %v725 = vld [vmem:[#allocation2 + $0x78] sm:$0xff]
  %v726 = vld [vmem:[#allocation2 + $0x80] sm:$0xff]
  %v727 = vld [vmem:[#allocation2 + $0x88] sm:$0xff]
  %v728 = vld [vmem:[#allocation2 + $0x90] sm:$0xff]
  %v729 = vld [vmem:[#allocation2 + $0x98] sm:$0xff]
  %v730 = vld [vmem:[#allocation2 + $0xa0] sm:$0xff]
  %v731 = vld [vmem:[#allocation2 + $0xa8] sm:$0xff]
  %v732 = vld [vmem:[#allocation2 + $0xb0] sm:$0xff]
  %v733 = vld [vmem:[#allocation2 + $0xb8] sm:$0xff]
  %v734 = vld [vmem:[#allocation2 + $0xc0] sm:$0xff]
  %v735 = vld [vmem:[#allocation2 + $0xc8] sm:$0xff]
  %v736 = vld [vmem:[#allocation2 + $0xd0] sm:$0xff]
  %v737 = vld [vmem:[#allocation2 + $0xd8] sm:$0xff]
  %v738 = vld [vmem:[#allocation2 + $0xe0] sm:$0xff]
  %v739 = vld [vmem:[#allocation2 + $0xe8] sm:$0xff]
  %v740 = vld [vmem:[#allocation2 + $0xf0] sm:$0xff]
  %v741 = vld [vmem:[#allocation2 + $0xf8] sm:$0xff]
  %v742 = vld [vmem:[#allocation2 + $0x100] sm:$0xff]
  %v743 = vld [vmem:[#allocation2 + $0x108] sm:$0xff]
  %v744 = vld [vmem:[#allocation2 + $0x110] sm:$0xff]
  %v745 = vld [vmem:[#allocation2 + $0x118] sm:$0xff]
  %v746 = vld [vmem:[#allocation2 + $0x120] sm:$0xff]
  %v747 = vld [vmem:[#allocation2 + $0x128] sm:$0xff]
  %v748 = vld [vmem:[#allocation2 + $0x130] sm:$0xff]
  %v749 = vld [vmem:[#allocation2 + $0x138] sm:$0xff]
  %v750 = vld [vmem:[#allocation2 + $0x140] sm:$0xff]
  %v751 = vld [vmem:[#allocation2 + $0x148] sm:$0xff]
  %v752 = vld [vmem:[#allocation2 + $0x150] sm:$0xff]
  %v753 = vld [vmem:[#allocation2 + $0x158] sm:$0xff]
  %v754 = vld [vmem:[#allocation2 + $0x160] sm:$0xff]
  %v755 = vld [vmem:[#allocation2 + $0x168] sm:$0xff]
  %v756 = vld [vmem:[#allocation2 + $0x170] sm:$0xff]
  %v757 = vld [vmem:[#allocation2 + $0x178] sm:$0xff]
  %v758 = vld [vmem:[#allocation2 + $0x180] sm:$0xff]
  %v759 = vld [vmem:[#allocation2 + $0x188] sm:$0xff]
  %v760 = vld [vmem:[#allocation2 + $0x190] sm:$0xff]
  %v761 = vld [vmem:[#allocation2 + $0x198] sm:$0xff]
  %v762 = vld [vmem:[#allocation2 + $0x1a0] sm:$0xff]
  %v763 = vld [vmem:[#allocation2 + $0x1a8] sm:$0xff]
  %v764 = vld [vmem:[#allocation2 + $0x1b0] sm:$0xff]
  %v765 = vld [vmem:[#allocation2 + $0x1b8] sm:$0xff]
  %v766 = vld [vmem:[#allocation2 + $0x1c0] sm:$0xff]
  %v767 = vld [vmem:[#allocation2 + $0x1c8] sm:$0xff]
  %v768 = vld [vmem:[#allocation2 + $0x1d0] sm:$0xff]
  %v769 = vld [vmem:[#allocation2 + $0x1d8] sm:$0xff]
  %v770 = vld [vmem:[#allocation2 + $0x1e0] sm:$0xff]
  %v771 = vld [vmem:[#allocation2 + $0x1e8] sm:$0xff]
  %v772 = vld [vmem:[#allocation2 + $0x1f0] sm:$0xff]
  %v773 = vld [vmem:[#allocation2 + $0x1f8] sm:$0xff]
  %v774 = vld [vmem:[#allocation2 + $0x200] sm:$0xff]
  %v775 = vld [vmem:[#allocation2 + $0x208] sm:$0xff]
  %v776 = vld [vmem:[#allocation2 + $0x210] sm:$0xff]
  %v777 = vld [vmem:[#allocation2 + $0x218] sm:$0xff]
  %v778 = vld [vmem:[#allocation2 + $0x220] sm:$0xff]
  %v779 = vld [vmem:[#allocation2 + $0x228] sm:$0xff]
  %v780 = vld [vmem:[#allocation2 + $0x230] sm:$0xff]
  %v781 = vld [vmem:[#allocation2 + $0x238] sm:$0xff]
  %v782 = vld [vmem:[#allocation2 + $0x240] sm:$0xff]
  %v783 = vld [vmem:[#allocation2 + $0x248] sm:$0xff]
  %v784 = vld [vmem:[#allocation2 + $0x250] sm:$0xff]
  %v785 = vld [vmem:[#allocation2 + $0x258] sm:$0xff]
  %v786 = vld [vmem:[#allocation2 + $0x260] sm:$0xff]
  %v787 = vld [vmem:[#allocation2 + $0x268] sm:$0xff]
  %v788 = vld [vmem:[#allocation2 + $0x270] sm:$0xff]
  %v789 = vld [vmem:[#allocation2 + $0x278] sm:$0xff]
  %v790 = vld [vmem:[#allocation2 + $0x280] sm:$0xff]
  %v791 = vld [vmem:[#allocation2 + $0x288] sm:$0xff]
  %v792 = vld [vmem:[#allocation2 + $0x290] sm:$0xff]
  %v793 = vld [vmem:[#allocation2 + $0x298] sm:$0xff]
  %v794 = vld [vmem:[#allocation2 + $0x2a0] sm:$0xff]
  %v795 = vld [vmem:[#allocation2 + $0x2a8] sm:$0xff]
  %v796 = vld [vmem:[#allocation2 + $0x2b0] sm:$0xff]
  %v797 = vld [vmem:[#allocation2 + $0x2b8] sm:$0xff]
  %v798 = vld [vmem:[#allocation2 + $0x2c0] sm:$0xff]
  %v799 = vld [vmem:[#allocation2 + $0x2c8] sm:$0xff]
  %v800 = vld [vmem:[#allocation2 + $0x2d0] sm:$0xff]
  %v801 = vld [vmem:[#allocation2 + $0x2d8] sm:$0xff]
  %v802 = vld [vmem:[#allocation2 + $0x2e0] sm:$0xff]
  %v803 = vld [vmem:[#allocation2 + $0x2e8] sm:$0xff]
  %v804 = vld [vmem:[#allocation2 + $0x2f0] sm:$0xff]
  %v805 = vld [vmem:[#allocation2 + $0x2f8] sm:$0xff]
  %v806 = vld [vmem:[#allocation2 + $0x300] sm:$0xff]
  %v807 = vld [vmem:[#allocation2 + $0x308] sm:$0xff]
  %v808 = vld [vmem:[#allocation2 + $0x310] sm:$0xff]
  %v809 = vld [vmem:[#allocation2 + $0x318] sm:$0xff]
  %v810 = vld [vmem:[#allocation2 + $0x320] sm:$0xff]
  %v811 = vld [vmem:[#allocation2 + $0x328] sm:$0xff]
  %v812 = vld [vmem:[#allocation2 + $0x330] sm:$0xff]
  %v813 = vld [vmem:[#allocation2 + $0x338] sm:$0xff]
  %v814 = vld [vmem:[#allocation2 + $0x340] sm:$0xff]
  %v815 = vld [vmem:[#allocation2 + $0x348] sm:$0xff]
  %v816 = vld [vmem:[#allocation2 + $0x350] sm:$0xff]
  %v817 = vld [vmem:[#allocation2 + $0x358] sm:$0xff]
  %v818 = vld [vmem:[#allocation2 + $0x360] sm:$0xff]
  %v819 = vld [vmem:[#allocation2 + $0x368] sm:$0xff]
  %v820 = vld [vmem:[#allocation2 + $0x370] sm:$0xff]
  %v821 = vld [vmem:[#allocation2 + $0x378] sm:$0xff]
  %v822 = vld [vmem:[#allocation2 + $0x380] sm:$0xff]
  %v823 = vld [vmem:[#allocation2 + $0x388] sm:$0xff]
  %v824 = vld [vmem:[#allocation2 + $0x390] sm:$0xff]
  %v825 = vld [vmem:[#allocation2 + $0x398] sm:$0xff]
  %v826 = vld [vmem:[#allocation2 + $0x3a0] sm:$0xff]
  %v827 = vld [vmem:[#allocation2 + $0x3a8] sm:$0xff]
  %v828 = vld [vmem:[#allocation2 + $0x3b0] sm:$0xff]
  %v829 = vld [vmem:[#allocation2 + $0x3b8] sm:$0xff]
  %v830 = vld [vmem:[#allocation2 + $0x3c0] sm:$0xff]
  %v831 = vld [vmem:[#allocation2 + $0x3c8] sm:$0xff]
  %v832 = vld [vmem:[#allocation2 + $0x3d0] sm:$0xff]
  %v833 = vld [vmem:[#allocation2 + $0x3d8] sm:$0xff]
  %v834 = vld [vmem:[#allocation2 + $0x3e0] sm:$0xff]
  %v835 = vld [vmem:[#allocation2 + $0x3e8] sm:$0xff]
  %v836 = vld [vmem:[#allocation2 + $0x3f0] sm:$0xff]
  %v837 = vld [vmem:[#allocation2 + $0x3f8] sm:$0xff]
  %v838 = vld [vmem:[#allocation2 + $0x400] sm:$0xff]
  %v839 = vld [vmem:[#allocation2 + $0x408] sm:$0xff]
  %v840 = vld [vmem:[#allocation2 + $0x410] sm:$0xff]
  %v841 = vld [vmem:[#allocation2 + $0x418] sm:$0xff]
  %v842 = vld [vmem:[#allocation2 + $0x420] sm:$0xff]
  %v843 = vld [vmem:[#allocation2 + $0x428] sm:$0xff]
  %v844 = vld [vmem:[#allocation2 + $0x430] sm:$0xff]
  %v845 = vld [vmem:[#allocation2 + $0x438] sm:$0xff]
  %v846 = vld [vmem:[#allocation2 + $0x440] sm:$0xff]
  %v847 = vld [vmem:[#allocation2 + $0x448] sm:$0xff]
  %v848 = vld [vmem:[#allocation2 + $0x450] sm:$0xff]
  %v849 = vld [vmem:[#allocation2 + $0x458] sm:$0xff]
  %v850 = vld [vmem:[#allocation2 + $0x460] sm:$0xff]
  %v851 = vld [vmem:[#allocation2 + $0x468] sm:$0xff]
  %v852 = vld [vmem:[#allocation2 + $0x470] sm:$0xff]
  %v853 = vld [vmem:[#allocation2 + $0x478] sm:$0xff]
  %v854 = vld [vmem:[#allocation2 + $0x480] sm:$0xff]
  %v855 = vld [vmem:[#allocation2 + $0x488] sm:$0xff]
  %v856 = vld [vmem:[#allocation2 + $0x490] sm:$0xff]
  %v857 = vld [vmem:[#allocation2 + $0x498] sm:$0xff]
  %v858 = vld [vmem:[#allocation2 + $0x4a0] sm:$0xf]
  %v859 = vld [vmem:[#allocation2 + $0x4a8] sm:$0xf]
  %v860 = vld [vmem:[#allocation2 + $0x4b0] sm:$0xf]
  %v861 = vld [vmem:[#allocation2 + $0x4b8] sm:$0xf]
  %v863 = vsel %vm579, %v705, 0
  %v866 = vsel %vm497, %v858, 0
  %v869 = vsel %vm497, %v859, 0
  %v872 = vsel %vm497, %v860, 0
  %v875 = vsel %vm497, %v861, 0
  %877 = vmatpush.msra.mxu0 %v770
  %878 = vmatpush.msra.mxu0 %v766
  %879 = vmatpush.msra.mxu0 %v762
  %880 = vmatpush.msra.mxu0 %v758
  %881 = vmatpush.msra.mxu0 %v754
  %882 = vmatpush.msra.mxu0 %v750
  %883 = vmatpush.msra.mxu0 %v746
  %884 = vmatpush.msra.mxu0 %v742
  %885 = vmatpush.msra.mxu0 %v738
  %886 = vmatpush.msra.mxu0 %v734
  %887 = vmatpush.msra.mxu0 %v730
  %888 = vmatpush.msra.mxu0 %v726
  %889 = vmatpush.msra.mxu0 %v722
  %890 = vmatpush.msra.mxu0 %v718
  %891 = vmatpush.msra.mxu0 %v714
  %892 = vmatpush.msra.mxu0 %v710
  %893 = vmatmul.f32.gmra.mxu0 %v703
  %v894 = vpop.f32.mrf.mxu0
  %v895 = vadd.f32 0.0, %v894
  %896 = vdwg.mxu0
  %897 = vmatpush.msra.mxu0 %v834
  %898 = vmatpush.msra.mxu0 %v830
  %899 = vmatpush.msra.mxu0 %v826
  %900 = vmatpush.msra.mxu0 %v822
  %901 = vmatpush.msra.mxu0 %v818
  %902 = vmatpush.msra.mxu0 %v814
  %903 = vmatpush.msra.mxu0 %v810
  %904 = vmatpush.msra.mxu0 %v806
  %905 = vmatpush.msra.mxu0 %v802
  %906 = vmatpush.msra.mxu0 %v798
  %907 = vmatpush.msra.mxu0 %v794
  %908 = vmatpush.msra.mxu0 %v790
  %909 = vmatpush.msra.mxu0 %v786
  %910 = vmatpush.msra.mxu0 %v782
  %911 = vmatpush.msra.mxu0 %v778
  %912 = vmatpush.msra.mxu0 %v774
  %913 = vmatmul.f32.gmra.mxu0 %v704
  %v914 = vpop.f32.mrf.mxu0
  %v915 = vadd.f32 %v895, %v914
  %916 = vdwg.mxu0
  %917 = vmatpush.msra.mxu0 0.0
  %918 = vmatpush.msra.mxu0 0.0
  %919 = vmatpush.msra.mxu0 0.0
  %920 = vmatpush.msra.mxu0 0.0
  %921 = vmatpush.msra.mxu0 0.0
  %922 = vmatpush.msra.mxu0 0.0
  %923 = vmatpush.msra.mxu0 0.0
  %924 = vmatpush.msra.mxu0 0.0
  %925 = vmatpush.msra.mxu0 0.0
  %926 = vmatpush.msra.mxu0 0.0
  %927 = vmatpush.msra.mxu0 %v866
  %928 = vmatpush.msra.mxu0 %v854
  %929 = vmatpush.msra.mxu0 %v850
  %930 = vmatpush.msra.mxu0 %v846
  %931 = vmatpush.msra.mxu0 %v842
  %932 = vmatpush.msra.mxu0 %v838
  %933 = vmatmul.f32.gmra.mxu0 %v863
  %v934 = vpop.f32.mrf.mxu0
  %v935 = vadd.f32 %v915, %v934
  %936 = vdwg.mxu0
  %937 = vmatpush.msra.mxu0 %v771
  %938 = vmatpush.msra.mxu0 %v767
  %939 = vmatpush.msra.mxu0 %v763
  %940 = vmatpush.msra.mxu0 %v759
  %941 = vmatpush.msra.mxu0 %v755
  %942 = vmatpush.msra.mxu0 %v751
  %943 = vmatpush.msra.mxu0 %v747
  %944 = vmatpush.msra.mxu0 %v743
  %945 = vmatpush.msra.mxu0 %v739
  %946 = vmatpush.msra.mxu0 %v735
  %947 = vmatpush.msra.mxu0 %v731
  %948 = vmatpush.msra.mxu0 %v727
  %949 = vmatpush.msra.mxu0 %v723
  %950 = vmatpush.msra.mxu0 %v719
  %951 = vmatpush.msra.mxu0 %v715
  %952 = vmatpush.msra.mxu0 %v711
  %953 = vmatmul.f32.gmra.mxu0 %v703
  %v954 = vpop.f32.mrf.mxu0
  %v955 = vadd.f32 0.0, %v954
  %956 = vdwg.mxu0
  %957 = vmatpush.msra.mxu0 %v835
  %958 = vmatpush.msra.mxu0 %v831
  %959 = vmatpush.msra.mxu0 %v827
  %960 = vmatpush.msra.mxu0 %v823
  %961 = vmatpush.msra.mxu0 %v819
  %962 = vmatpush.msra.mxu0 %v815
  %963 = vmatpush.msra.mxu0 %v811
  %964 = vmatpush.msra.mxu0 %v807
  %965 = vmatpush.msra.mxu0 %v803
  %966 = vmatpush.msra.mxu0 %v799
  %967 = vmatpush.msra.mxu0 %v795
  %968 = vmatpush.msra.mxu0 %v791
  %969 = vmatpush.msra.mxu0 %v787
  %970 = vmatpush.msra.mxu0 %v783
  %971 = vmatpush.msra.mxu0 %v779
  %972 = vmatpush.msra.mxu0 %v775
  %973 = vmatmul.f32.gmra.mxu0 %v704
  %v974 = vpop.f32.mrf.mxu0
  %v975 = vadd.f32 %v955, %v974
  %976 = vdwg.mxu0
  %977 = vmatpush.msra.mxu0 0.0
  %978 = vmatpush.msra.mxu0 0.0
  %979 = vmatpush.msra.mxu0 0.0
  %980 = vmatpush.msra.mxu0 0.0
  %981 = vmatpush.msra.mxu0 0.0
  %982 = vmatpush.msra.mxu0 0.0
  %983 = vmatpush.msra.mxu0 0.0
  %984 = vmatpush.msra.mxu0 0.0
  %985 = vmatpush.msra.mxu0 0.0
  %986 = vmatpush.msra.mxu0 0.0
  %987 = vmatpush.msra.mxu0 %v869
  %988 = vmatpush.msra.mxu0 %v855
  %989 = vmatpush.msra.mxu0 %v851
  %990 = vmatpush.msra.mxu0 %v847
  %991 = vmatpush.msra.mxu0 %v843
  %992 = vmatpush.msra.mxu0 %v839
  %993 = vmatmul.f32.gmra.mxu0 %v863
  %v994 = vpop.f32.mrf.mxu0
  %v995 = vadd.f32 %v975, %v994
  %996 = vdwg.mxu0
  %997 = vmatpush.msra.mxu0 %v772
  %998 = vmatpush.msra.mxu0 %v768
  %999 = vmatpush.msra.mxu0 %v764
  %1000 = vmatpush.msra.mxu0 %v760
  %1001 = vmatpush.msra.mxu0 %v756
  %1002 = vmatpush.msra.mxu0 %v752
  %1003 = vmatpush.msra.mxu0 %v748
  %1004 = vmatpush.msra.mxu0 %v744
  %1005 = vmatpush.msra.mxu0 %v740
  %1006 = vmatpush.msra.mxu0 %v736
  %1007 = vmatpush.msra.mxu0 %v732
  %1008 = vmatpush.msra.mxu0 %v728
  %1009 = vmatpush.msra.mxu0 %v724
  %1010 = vmatpush.msra.mxu0 %v720
  %1011 = vmatpush.msra.mxu0 %v716
  %1012 = vmatpush.msra.mxu0 %v712
  %1013 = vmatmul.f32.gmra.mxu0 %v703
  %v1014 = vpop.f32.mrf.mxu0
  %v1015 = vadd.f32 0.0, %v1014
  %1016 = vdwg.mxu0
  %1017 = vmatpush.msra.mxu0 %v836
  %1018 = vmatpush.msra.mxu0 %v832
  %1019 = vmatpush.msra.mxu0 %v828
  %1020 = vmatpush.msra.mxu0 %v824
  %1021 = vmatpush.msra.mxu0 %v820
  %1022 = vmatpush.msra.mxu0 %v816
  %1023 = vmatpush.msra.mxu0 %v812
  %1024 = vmatpush.msra.mxu0 %v808
  %1025 = vmatpush.msra.mxu0 %v804
  %1026 = vmatpush.msra.mxu0 %v800
  %1027 = vmatpush.msra.mxu0 %v796
  %1028 = vmatpush.msra.mxu0 %v792
  %1029 = vmatpush.msra.mxu0 %v788
  %1030 = vmatpush.msra.mxu0 %v784
  %1031 = vmatpush.msra.mxu0 %v780
  %1032 = vmatpush.msra.mxu0 %v776
  %1033 = vmatmul.f32.gmra.mxu0 %v704
  %v1034 = vpop.f32.mrf.mxu0
  %v1035 = vadd.f32 %v1015, %v1034
  %1036 = vdwg.mxu0
  %1037 = vmatpush.msra.mxu0 0.0
  %1038 = vmatpush.msra.mxu0 0.0
  %1039 = vmatpush.msra.mxu0 0.0
  %1040 = vmatpush.msra.mxu0 0.0
  %1041 = vmatpush.msra.mxu0 0.0
  %1042 = vmatpush.msra.mxu0 0.0
  %1043 = vmatpush.msra.mxu0 0.0
  %1044 = vmatpush.msra.mxu0 0.0
  %1045 = vmatpush.msra.mxu0 0.0
  %1046 = vmatpush.msra.mxu0 0.0
  %1047 = vmatpush.msra.mxu0 %v872
  %1048 = vmatpush.msra.mxu0 %v856
  %1049 = vmatpush.msra.mxu0 %v852
  %1050 = vmatpush.msra.mxu0 %v848
  %1051 = vmatpush.msra.mxu0 %v844
  %1052 = vmatpush.msra.mxu0 %v840
  %1053 = vmatmul.f32.gmra.mxu0 %v863
  %v1054 = vpop.f32.mrf.mxu0
  %v1055 = vadd.f32 %v1035, %v1054
  %1056 = vdwg.mxu0
  %1057 = vmatpush.msra.mxu0 %v773
  %1058 = vmatpush.msra.mxu0 %v769
  %1059 = vmatpush.msra.mxu0 %v765
  %1060 = vmatpush.msra.mxu0 %v761
  %1061 = vmatpush.msra.mxu0 %v757
  %1062 = vmatpush.msra.mxu0 %v753
  %1063 = vmatpush.msra.mxu0 %v749
  %1064 = vmatpush.msra.mxu0 %v745
  %1065 = vmatpush.msra.mxu0 %v741
  %1066 = vmatpush.msra.mxu0 %v737
  %1067 = vmatpush.msra.mxu0 %v733
  %1068 = vmatpush.msra.mxu0 %v729
  %1069 = vmatpush.msra.mxu0 %v725
  %1070 = vmatpush.msra.mxu0 %v721
  %1071 = vmatpush.msra.mxu0 %v717
  %1072 = vmatpush.msra.mxu0 %v713
  %1073 = vmatmul.f32.gmra.mxu0 %v703
  %v1074 = vpop.f32.mrf.mxu0
  %v1075 = vadd.f32 0.0, %v1074
  %1076 = vdwg.mxu0
  %1077 = vmatpush.msra.mxu0 %v837
  %1078 = vmatpush.msra.mxu0 %v833
  %1079 = vmatpush.msra.mxu0 %v829
  %1080 = vmatpush.msra.mxu0 %v825
  %1081 = vmatpush.msra.mxu0 %v821
  %1082 = vmatpush.msra.mxu0 %v817
  %1083 = vmatpush.msra.mxu0 %v813
  %1084 = vmatpush.msra.mxu0 %v809
  %1085 = vmatpush.msra.mxu0 %v805
  %1086 = vmatpush.msra.mxu0 %v801
  %1087 = vmatpush.msra.mxu0 %v797
  %1088 = vmatpush.msra.mxu0 %v793
  %1089 = vmatpush.msra.mxu0 %v789
  %1090 = vmatpush.msra.mxu0 %v785
  %1091 = vmatpush.msra.mxu0 %v781
  %1092 = vmatpush.msra.mxu0 %v777
  %1093 = vmatmul.f32.gmra.mxu0 %v704
  %v1094 = vpop.f32.mrf.mxu0
  %v1095 = vadd.f32 %v1075, %v1094
  %1096 = vdwg.mxu0
  %1097 = vmatpush.msra.mxu0 0.0
  %1098 = vmatpush.msra.mxu0 0.0
  %1099 = vmatpush.msra.mxu0 0.0
  %1100 = vmatpush.msra.mxu0 0.0
  %1101 = vmatpush.msra.mxu0 0.0
  %1102 = vmatpush.msra.mxu0 0.0
  %1103 = vmatpush.msra.mxu0 0.0
  %1104 = vmatpush.msra.mxu0 0.0
  %1105 = vmatpush.msra.mxu0 0.0
  %1106 = vmatpush.msra.mxu0 0.0
  %1107 = vmatpush.msra.mxu0 %v875
  %1108 = vmatpush.msra.mxu0 %v857
  %1109 = vmatpush.msra.mxu0 %v853
  %1110 = vmatpush.msra.mxu0 %v849
  %1111 = vmatpush.msra.mxu0 %v845
  %1112 = vmatpush.msra.mxu0 %v841
  %1113 = vmatmul.f32.gmra.mxu0 %v863
  %v1114 = vpop.f32.mrf.mxu0
  %v1115 = vadd.f32 %v1095, %v1114
  %1116 = vdwg.mxu0
  %v1117 = vrot.slane %v935, 4
  %v1118 = vadd.f32 %v935, %v1117
  %v1119 = vrot.slane %v1118, 2
  %v1120 = vadd.f32 %v1118, %v1119
  %v1121 = vrot.slane %v1120, 1
  %v1122 = vadd.f32 %v1120, %v1121
  %v1123 = vrot.slane %v995, 4
  %v1124 = vadd.f32 %v995, %v1123
  %v1125 = vrot.slane %v1124, 2
  %v1126 = vadd.f32 %v1124, %v1125
  %v1127 = vrot.slane %v1126, 1
  %v1128 = vadd.f32 %v1126, %v1127
  %v1129 = vrot.slane %v1055, 4
  %v1130 = vadd.f32 %v1055, %v1129
  %v1131 = vrot.slane %v1130, 2
  %v1132 = vadd.f32 %v1130, %v1131
  %v1133 = vrot.slane %v1132, 1
  %v1134 = vadd.f32 %v1132, %v1133
  %vm1135 = vcmask 130048
  %v1136 = vsel %vm1135, %v1115, 0.0
  %v1137 = vrot.slane %v1136, 4
  %v1138 = vadd.f32 %v1136, %v1137
  %v1139 = vrot.slane %v1138, 2
  %v1140 = vadd.f32 %v1138, %v1139
  %v1141 = vrot.slane %v1140, 1
  %v1142 = vadd.f32 %v1140, %v1141
  %v1143 = vmul.f32 %v1122, %v593
  %v1144 = vmul.f32 %v1128, %v593
  %v1145 = vmul.f32 %v1134, %v593
  %v1146 = vmul.f32 %v1142, %v593
  %v1147 = vsub.f32 %v935, %v1143
  %v1148 = vsub.f32 %v995, %v1144
  %v1149 = vsub.f32 %v1055, %v1145
  %v1150 = vsub.f32 %v1115, %v1146
  %v1151 = vmul.f32 %v1147, %v1147
  %v1152 = vmul.f32 %v1148, %v1148
  %v1153 = vmul.f32 %v1149, %v1149
  %v1154 = vmul.f32 %v1150, %v1150
  %v1155 = vrot.slane %v1151, 4
  %v1156 = vadd.f32 %v1151, %v1155
  %v1157 = vrot.slane %v1156, 2
  %v1158 = vadd.f32 %v1156, %v1157
  %v1159 = vrot.slane %v1158, 1
  %v1160 = vadd.f32 %v1158, %v1159
  %v1161 = vrot.slane %v1152, 4
  %v1162 = vadd.f32 %v1152, %v1161
  %v1163 = vrot.slane %v1162, 2
  %v1164 = vadd.f32 %v1162, %v1163
  %v1165 = vrot.slane %v1164, 1
  %v1166 = vadd.f32 %v1164, %v1165
  %v1167 = vrot.slane %v1153, 4
  %v1168 = vadd.f32 %v1153, %v1167
  %v1169 = vrot.slane %v1168, 2
  %v1170 = vadd.f32 %v1168, %v1169
  %v1171 = vrot.slane %v1170, 1
  %v1172 = vadd.f32 %v1170, %v1171
  %v1173 = vsel %vm1135, %v1154, 0.0
  %v1174 = vrot.slane %v1173, 4
  %v1175 = vadd.f32 %v1173, %v1174
  %v1176 = vrot.slane %v1175, 2
  %v1177 = vadd.f32 %v1175, %v1176
  %v1178 = vrot.slane %v1177, 1
  %v1179 = vadd.f32 %v1177, %v1178
  %v1180 = vmul.f32 %v1160, %v593
  %v1181 = vmul.f32 %v1166, %v593
  %v1182 = vmul.f32 %v1172, %v593
  %v1183 = vmul.f32 %v1179, %v593
  %v1184 = vld [vmem:[%s2 + $0x6] sm:$0xf]
  %v1185 = vadd.f32 %v1180, 1e-05
  %v1186 = vadd.f32 %v1181, 1e-05
  %v1187 = vadd.f32 %v1182, 1e-05
  %v1188 = vadd.f32 %v1183, 1e-05
  %v1189 = vrsqrt.pop %v1185
  %v1190 = vmul.f32 %v1189, %v1185
  %v1191 = vmul.f32 %v1190, %v1189
  %v1192 = vmul.f32 0.5, %v1191
  %v1193 = vsub.f32 1.5, %v1192
  %v1194 = vmul.f32 %v1189, %v1193
  %vm1195 = vweird.f32 %v1185
  %vm1196 = vweird.f32 %v1189
  %vm1197 = vmor %vm1195, %vm1196
  %v1198 = vsel %vm1197, %v1189, %v1194
  %v1199 = vrsqrt.pop %v1186
  %v1200 = vmul.f32 %v1199, %v1186
  %v1201 = vmul.f32 %v1200, %v1199
  %v1202 = vmul.f32 0.5, %v1201
  %v1203 = vsub.f32 1.5, %v1202
  %v1204 = vmul.f32 %v1199, %v1203
  %vm1205 = vweird.f32 %v1186
  %vm1206 = vweird.f32 %v1199
  %vm1207 = vmor %vm1205, %vm1206
  %v1208 = vsel %vm1207, %v1199, %v1204
  %v1209 = vrsqrt.pop %v1187
  %v1210 = vmul.f32 %v1209, %v1187
  %v1211 = vmul.f32 %v1210, %v1209
  %v1212 = vmul.f32 0.5, %v1211
  %v1213 = vsub.f32 1.5, %v1212
  %v1214 = vmul.f32 %v1209, %v1213
  %vm1215 = vweird.f32 %v1187
  %vm1216 = vweird.f32 %v1209
  %vm1217 = vmor %vm1215, %vm1216
  %v1218 = vsel %vm1217, %v1209, %v1214
  %v1219 = vrsqrt.pop %v1188
  %v1220 = vmul.f32 %v1219, %v1188
  %v1221 = vmul.f32 %v1220, %v1219
  %v1222 = vmul.f32 0.5, %v1221
  %v1223 = vsub.f32 1.5, %v1222
  %v1224 = vmul.f32 %v1219, %v1223
  %vm1225 = vweird.f32 %v1188
  %vm1226 = vweird.f32 %v1219
  %vm1227 = vmor %vm1225, %vm1226
  %v1228 = vsel %vm1227, %v1219, %v1224
  %v1233 = vrot.slane %v1208, 7
  %v1234 = vrot.slane %v1218, 6
  %v1235 = vrot.slane %v1228, 5
  %v1236 = vsel %vm664, %v1198, %v1233
  %vm1237 = vcmask 1042434
  %v1238 = vsel %vm1237, %v1234, %v1235
  %v1239 = vsel %vm666, %v1236, %v1238
  %v1241 = vmul.f32 %v1184, %v1239
  %v1242 = vld [vmem:[%s2 + $0xa] sm:$0xf]
  %v1244 = vperm.slane %v1241, 0
  %v1245 = vperm.slane %v1241, 1
  %v1246 = vperm.slane %v1241, 2
  %v1247 = vperm.slane %v1241, 3
  %v1252 = vmul.f32 %v1143, %v1244
  %v1253 = vmul.f32 %v1144, %v1245
  %v1254 = vmul.f32 %v1145, %v1246
  %v1255 = vmul.f32 %v1146, %v1247
  %v1260 = vrot.slane %v1253, 7
  %v1261 = vrot.slane %v1254, 6
  %v1262 = vrot.slane %v1255, 5
  %v1263 = vsel %vm664, %v1252, %v1260
  %v1264 = vsel %vm1237, %v1261, %v1262
  %v1265 = vsel %vm666, %v1263, %v1264
  %v1267 = vsub.f32 %v1242, %v1265
  %v1268 = vmul.f32 %v935, %v1244
  %v1269 = vmul.f32 %v995, %v1245
  %v1270 = vmul.f32 %v1055, %v1246
  %v1271 = vmul.f32 %v1115, %v1247
  %v1273 = vperm.slane %v1267, 0
  %v1274 = vperm.slane %v1267, 1
  %v1275 = vperm.slane %v1267, 2
  %v1276 = vperm.slane %v1267, 3
  %v1281 = vadd.f32 %v1268, %v1273
  %v1282 = vadd.f32 %v1269, %v1274
  %v1283 = vadd.f32 %v1270, %v1275
  %v1284 = vadd.f32 %v1271, %v1276
  %v1285 = vmax.f32 %v1281, 0.0
  %v1286 = vmax.f32 %v1282, 0.0
  %v1287 = vmax.f32 %v1283, 0.0
  %v1288 = vmax.f32 %v1284, 0.0
  %s1289 = smul.u32 400, 1
  %s1290 = sshll.u32 %s1289, 4
  %1291 = dma.done %s336, %s1290
  %v1292 = vld [vmem:[#allocation3] sm:$0xff]
  %v1293 = vld [vmem:[#allocation3 + $0x8] sm:$0xff]
  %v1294 = vld [vmem:[#allocation3 + $0x10] sm:$0xff]
  %v1295 = vld [vmem:[#allocation3 + $0x18] sm:$0xff]
  %v1296 = vld [vmem:[#allocation3 + $0x20] sm:$0xff]
  %v1297 = vld [vmem:[#allocation3 + $0x28] sm:$0xff]
  %v1298 = vld [vmem:[#allocation3 + $0x30] sm:$0xff]
  %v1299 = vld [vmem:[#allocation3 + $0x38] sm:$0xff]
  %v1300 = vld [vmem:[#allocation3 + $0x40] sm:$0xff]
  %v1301 = vld [vmem:[#allocation3 + $0x48] sm:$0xff]
  %v1302 = vld [vmem:[#allocation3 + $0x50] sm:$0xff]
  %v1303 = vld [vmem:[#allocation3 + $0x58] sm:$0xff]
  %v1304 = vld [vmem:[#allocation3 + $0x60] sm:$0xff]
  %v1305 = vld [vmem:[#allocation3 + $0x68] sm:$0xff]
  %v1306 = vld [vmem:[#allocation3 + $0x70] sm:$0xff]
  %v1307 = vld [vmem:[#allocation3 + $0x78] sm:$0xff]
  %v1308 = vld [vmem:[#allocation3 + $0x80] sm:$0xff]
  %v1309 = vld [vmem:[#allocation3 + $0x88] sm:$0xff]
  %v1310 = vld [vmem:[#allocation3 + $0x90] sm:$0xff]
  %v1311 = vld [vmem:[#allocation3 + $0x98] sm:$0xff]
  %v1312 = vld [vmem:[#allocation3 + $0xa0] sm:$0xff]
  %v1313 = vld [vmem:[#allocation3 + $0xa8] sm:$0xff]
  %v1314 = vld [vmem:[#allocation3 + $0xb0] sm:$0xff]
  %v1315 = vld [vmem:[#allocation3 + $0xb8] sm:$0xff]
  %v1316 = vld [vmem:[#allocation3 + $0xc0] sm:$0xff]
  %v1317 = vld [vmem:[#allocation3 + $0xc8] sm:$0xff]
  %v1318 = vld [vmem:[#allocation3 + $0xd0] sm:$0xff]
  %v1319 = vld [vmem:[#allocation3 + $0xd8] sm:$0xff]
  %v1320 = vld [vmem:[#allocation3 + $0xe0] sm:$0xff]
  %v1321 = vld [vmem:[#allocation3 + $0xe8] sm:$0xff]
  %v1322 = vld [vmem:[#allocation3 + $0xf0] sm:$0xff]
  %v1323 = vld [vmem:[#allocation3 + $0xf8] sm:$0xff]
  %v1324 = vld [vmem:[#allocation3 + $0x100] sm:$0xff]
  %v1325 = vld [vmem:[#allocation3 + $0x108] sm:$0xff]
  %v1326 = vld [vmem:[#allocation3 + $0x110] sm:$0xff]
  %v1327 = vld [vmem:[#allocation3 + $0x118] sm:$0xff]
  %v1328 = vld [vmem:[#allocation3 + $0x120] sm:$0xff]
  %v1329 = vld [vmem:[#allocation3 + $0x128] sm:$0xff]
  %v1330 = vld [vmem:[#allocation3 + $0x130] sm:$0xff]
  %v1331 = vld [vmem:[#allocation3 + $0x138] sm:$0xff]
  %v1332 = vld [vmem:[#allocation3 + $0x140] sm:$0xff]
  %v1333 = vld [vmem:[#allocation3 + $0x148] sm:$0xff]
  %v1334 = vld [vmem:[#allocation3 + $0x150] sm:$0xff]
  %v1335 = vld [vmem:[#allocation3 + $0x158] sm:$0xff]
  %v1336 = vld [vmem:[#allocation3 + $0x160] sm:$0xff]
  %v1337 = vld [vmem:[#allocation3 + $0x168] sm:$0xff]
  %v1338 = vld [vmem:[#allocation3 + $0x170] sm:$0xff]
  %v1339 = vld [vmem:[#allocation3 + $0x178] sm:$0xff]
  %v1340 = vld [vmem:[#allocation3 + $0x180] sm:$0xff]
  %v1341 = vld [vmem:[#allocation3 + $0x188] sm:$0xff]
  %v1343 = vsel %vm1135, %v1288, 0
  %1345 = vmatpush.msra.mxu0 %v1307
  %1346 = vmatpush.msra.mxu0 %v1306
  %1347 = vmatpush.msra.mxu0 %v1305
  %1348 = vmatpush.msra.mxu0 %v1304
  %1349 = vmatpush.msra.mxu0 %v1303
  %1350 = vmatpush.msra.mxu0 %v1302
  %1351 = vmatpush.msra.mxu0 %v1301
  %1352 = vmatpush.msra.mxu0 %v1300
  %1353 = vmatpush.msra.mxu0 %v1299
  %1354 = vmatpush.msra.mxu0 %v1298
  %1355 = vmatpush.msra.mxu0 %v1297
  %1356 = vmatpush.msra.mxu0 %v1296
  %1357 = vmatpush.msra.mxu0 %v1295
  %1358 = vmatpush.msra.mxu0 %v1294
  %1359 = vmatpush.msra.mxu0 %v1293
  %1360 = vmatpush.msra.mxu0 %v1292
  %1361 = vmatmul.f32.gmra.mxu0 %v1285
  %v1362 = vpop.f32.mrf.mxu0
  %v1363 = vadd.f32 0.0, %v1362
  %1364 = vdwg.mxu0
  %1365 = vmatpush.msra.mxu0 %v1323
  %1366 = vmatpush.msra.mxu0 %v1322
  %1367 = vmatpush.msra.mxu0 %v1321
  %1368 = vmatpush.msra.mxu0 %v1320
  %1369 = vmatpush.msra.mxu0 %v1319
  %1370 = vmatpush.msra.mxu0 %v1318
  %1371 = vmatpush.msra.mxu0 %v1317
  %1372 = vmatpush.msra.mxu0 %v1316
  %1373 = vmatpush.msra.mxu0 %v1315
  %1374 = vmatpush.msra.mxu0 %v1314
  %1375 = vmatpush.msra.mxu0 %v1313
  %1376 = vmatpush.msra.mxu0 %v1312
  %1377 = vmatpush.msra.mxu0 %v1311
  %1378 = vmatpush.msra.mxu0 %v1310
  %1379 = vmatpush.msra.mxu0 %v1309
  %1380 = vmatpush.msra.mxu0 %v1308
  %1381 = vmatmul.f32.gmra.mxu0 %v1286
  %v1382 = vpop.f32.mrf.mxu0
  %v1383 = vadd.f32 %v1363, %v1382
  %1384 = vdwg.mxu0
  %1385 = vmatpush.msra.mxu0 %v1339
  %1386 = vmatpush.msra.mxu0 %v1338
  %1387 = vmatpush.msra.mxu0 %v1337
  %1388 = vmatpush.msra.mxu0 %v1336
  %1389 = vmatpush.msra.mxu0 %v1335
  %1390 = vmatpush.msra.mxu0 %v1334
  %1391 = vmatpush.msra.mxu0 %v1333
  %1392 = vmatpush.msra.mxu0 %v1332
  %1393 = vmatpush.msra.mxu0 %v1331
  %1394 = vmatpush.msra.mxu0 %v1330
  %1395 = vmatpush.msra.mxu0 %v1329
  %1396 = vmatpush.msra.mxu0 %v1328
  %1397 = vmatpush.msra.mxu0 %v1327
  %1398 = vmatpush.msra.mxu0 %v1326
  %1399 = vmatpush.msra.mxu0 %v1325
  %1400 = vmatpush.msra.mxu0 %v1324
  %1401 = vmatmul.f32.gmra.mxu0 %v1287
  %v1402 = vpop.f32.mrf.mxu0
  %v1403 = vadd.f32 %v1383, %v1402
  %1404 = vdwg.mxu0
  %1405 = vmatpush.msra.mxu0 0.0
  %1406 = vmatpush.msra.mxu0 0.0
  %1407 = vmatpush.msra.mxu0 0.0
  %1408 = vmatpush.msra.mxu0 0.0
  %1409 = vmatpush.msra.mxu0 0.0
  %1410 = vmatpush.msra.mxu0 0.0
  %1411 = vmatpush.msra.mxu0 0.0
  %1412 = vmatpush.msra.mxu0 0.0
  %1413 = vmatpush.msra.mxu0 0.0
  %1414 = vmatpush.msra.mxu0 0.0
  %1415 = vmatpush.msra.mxu0 0.0
  %1416 = vmatpush.msra.mxu0 0.0
  %1417 = vmatpush.msra.mxu0 0.0
  %1418 = vmatpush.msra.mxu0 0.0
  %1419 = vmatpush.msra.mxu0 %v1341
  %1420 = vmatpush.msra.mxu0 %v1340
  %1421 = vmatmul.f32.gmra.mxu0 %v1343
  %v1422 = vpop.f32.mrf.mxu0
  %v1423 = vadd.f32 %v1403, %v1422
  %1424 = vdwg.mxu0
  %v1425 = vsel %vm493, %v1423, 0.0
  %v1426 = vrot.slane %v1425, 4
  %v1427 = vadd.f32 %v1425, %v1426
  %v1428 = vrot.slane %v1427, 2
  %v1429 = vadd.f32 %v1427, %v1428
  %v1430 = vrot.slane %v1429, 1
  %v1431 = vadd.f32 %v1429, %v1430
  %v1432 = vmul.f32 %v1431, %v593
  %v1433 = vsub.f32 %v1423, %v1432
  %v1434 = vmul.f32 %v1433, %v1433
  %v1435 = vsel %vm493, %v1434, 0.0
  %v1436 = vrot.slane %v1435, 4
  %v1437 = vadd.f32 %v1435, %v1436
  %v1438 = vrot.slane %v1437, 2
  %v1439 = vadd.f32 %v1437, %v1438
  %v1440 = vrot.slane %v1439, 1
  %v1441 = vadd.f32 %v1439, %v1440
  %v1442 = vmul.f32 %v1441, %v593
  %v1443 = vld [vmem:[%s2 + $0xe] sm:$0x1]
  %v1444 = vadd.f32 %v1442, 1e-05
  %v1445 = vrsqrt.pop %v1444
  %v1446 = vmul.f32 %v1445, %v1444
  %v1447 = vmul.f32 %v1446, %v1445
  %v1448 = vmul.f32 0.5, %v1447
  %v1449 = vsub.f32 1.5, %v1448
  %v1450 = vmul.f32 %v1445, %v1449
  %vm1451 = vweird.f32 %v1444
  %vm1452 = vweird.f32 %v1445
  %vm1453 = vmor %vm1451, %vm1452
  %v1454 = vsel %vm1453, %v1445, %v1450
  %v1455 = vmul.f32 %v1443, %v1454
  %v1456 = vld [vmem:[%s2 + $0xf] sm:$0x1]
  %v1457 = vmul.f32 %v1432, %v1455
  %v1458 = vsub.f32 %v1456, %v1457
  %v1460 = vperm.slane %v1455, 0
  %v1462 = vmul.f32 %v1423, %v1460
  %v1464 = vperm.slane %v1458, 0
  %v1466 = vadd.f32 %v1462, %v1464
  %v1467 = vmax.f32 %v1466, 0.0
  %v1468 = vld [vmem:[%s2 + $0x10] sm:$0x1]
  %v1470 = vperm.slane %v1468, 0
  %v1472 = vmul.f32 %v1467, %v1470
  %v1473 = vsel %vm493, %v1472, 0.0
  %1474 = vadd.xlane.f32.xlu0 %v1473
  %v1475 = vpop.xlane.xlu0 %1474
  %v1476 = vld [vmem:[%s2 + $0x11] sm:$0x1]
  %v1478 = vperm.slane %v1476, 0
  %v1480 = vadd.f32 %v1475, %v1478
  %v1481 = vsub.f32 0.0, %v1480
  %v1482 = vmul.f32 %v1481, 1.442695
  %v1483 = vpow.pop %v1482
  %v1484 = vadd.f32 %v1483, 1.0
  %v1485 = vrcp.pop %v1484
  %v1486 = vmul.f32 %v1484, %v1485
  %v1487 = vsub.f32 1.0, %v1486
  %v1488 = vmul.f32 %v1485, %v1487
  %v1489 = vadd.f32 %v1485, %v1488
  %vm1490 = vweird.f32 %v1484
  %vm1491 = vweird.f32 %v1485
  %vm1492 = vmor %vm1490, %vm1491
  %v1493 = vsel %vm1492, %v1485, %v1489
  %v1494 = vand.u32 2147483647, %v1484
  %vm1495 = vcmp.eq.f32.partialorder %v1494, 8.507059e+37
  %v1496 = vand.u32 %v1484, 2147483648
  %v1497 = vor.u32 1.1754944e-38, %v1496
  %v1498 = vsel %vm1495, %v1497, %v1493
  %v1499 = vmul.f32 1.0, %v1498
  %v1500 = vlaneseq
  %v1501 = vand.u32 %v1500, 127
  %vm1502 = vcmp.eq.s32.totalorder %v1501, 0
  %v1503 = vsub.f32 1.0, %v1499
  %1505 = vset.pattern.permute.xlu0 0
  %1506 = vperm.xlu0 %1505, %v1503
  %v1507 = vpop.permute.xlu0 %1506
  %1510 = vset.pattern.permute.xlu0 0
  %1511 = vperm.xlu0 %1510, %v1499
  %v1512 = vpop.permute.xlu0 %1511
  %v1514 = vsel %vm1502, %v1507, %v1512
  %vm1515 = vcmask 15360
  %1516 = vst.msk [vmem:[%s5] sm:$0xff] %vm1515, %v1514
  // Predicated region
  $region52: #{tpu_custom_call.1} parent=0 // pred_check
    _
  $region53: #{tpu_custom_call.1} parent=0 // pred_check_branch
    %1518 = sbr.rel (0) target = $region55
  $region54: #{tpu_custom_call.1} parent=0 // pred_region
    _
  $region55: #{tpu_custom_call.1} parent=0 // pred_fallthru
    _
  // Predicated region
  $region56: #{tpu_custom_call.1} parent=0 // pred_check
    _
  $region57: #{tpu_custom_call.1} parent=0 // pred_check_branch
    %1520 = sbr.rel (0) target = $region59
  $region58: #{tpu_custom_call.1} parent=0 // pred_region
    _
  $region59: #{tpu_custom_call.1} parent=0 // pred_fallthru
    _
  %1521 = vsyncmov [#allocation4]
  %s1522 = vpop.sfrf %1521
  %p1523 = scmp.eq.s32.totalorder %s1522, 0
  %p1524 = pneg %p1523
  %1526 = shalt.err (%p1524)
  %s1527 = scalar_lea.sflag [#allocation4], 1
  %1528 = vsyncmov %s1527
  %s1529 = vpop.sfrf %1528
  %p1530 = scmp.eq.s32.totalorder %s1529, 0
  %p1531 = pneg %p1530
  %1533 = shalt.err (%p1531)

</llo_original>
